<compile_context>
chip_gen: v6e
topology: v6e:2x2x1
jax: 0.10.0
libtpu: 0.0.40
codegen_flags: <defaults>
</compile_context>

<pallas_src>
import jax
import jax.numpy as jnp
from jax.experimental import pallas as pl
from jax.experimental.pallas import tpu as pltpu


def _round_up(x, m):
    return ((x + m - 1) // m) * m


# ----------------------------------------------------------------------------
# Kernel: fused 6-layer MLP (Ph_wc_mean followed by Pv_h_mean), one batch tile.
# ----------------------------------------------------------------------------
def generation_net_kernel(
    w_ref, c_ref,                    # (TM, w_dim) f32, (TM, n_classes) f32
    w1w_ref, w1c_ref, b1_ref,        # (w_dim,512) bf16, (n_classes,512) bf16, (1,512) bf16
    w2_ref, b2_ref,                  # (512,512) bf16, (1,512) bf16
    w3_ref, b3_ref,                  # (512,h_dim) bf16, (1,h_dim) bf16
    w4_ref, b4_ref,                  # (h_dim,512) bf16, (1,512) bf16
    w5_ref, b5_ref,                  # (512,512) bf16, (1,512) bf16
    w6_ref, b6_ref,                  # (512,v_dim) bf16, (1,v_dim) bf16
    out_ref,                         # (TM, v_dim) f32
):
    f32 = jnp.float32
    bf16 = jnp.bfloat16

    def dense(x_f32, wr, br):
        acc = jnp.dot(x_f32.astype(bf16), wr[...], preferred_element_type=f32)
        return acc + br[...].astype(f32)

    # Layer 1 with the concat folded in: x @ W1 == w @ W1_w + c @ W1_c
    t = (jnp.dot(w_ref[...].astype(bf16), w1w_ref[...], preferred_element_type=f32)
         + jnp.dot(c_ref[...].astype(bf16), w1c_ref[...], preferred_element_type=f32)
         + b1_ref[...].astype(f32))
    t = jnp.maximum(t, 0.0)
    t = jnp.maximum(dense(t, w2_ref, b2_ref), 0.0)
    h = dense(t, w3_ref, b3_ref)                       # Ph_wc_mean output

    t = jnp.maximum(dense(h, w4_ref, b4_ref), 0.0)
    t = jnp.maximum(dense(t, w5_ref, b5_ref), 0.0)
    v = dense(t, w6_ref, b6_ref)                       # Pv_h_mean output

    out_ref[...] = v.astype(out_ref.dtype)


# ----------------------------------------------------------------------------
# Wrapper: batch grid, constant-index (VMEM-resident) weight BlockSpecs.
# ----------------------------------------------------------------------------
def generation_net_forward(w, c, params, *, tm=256):
    """w: (B, w_dim) f32, c: (B, n_classes) f32 -> v: (B, v_dim) f32."""
    B, w_dim = w.shape
    n_classes = c.shape[1]
    v_dim = params["w6"].shape[1]

    # Row tile: multiple of 8 sublanes; 256 rows fills an MXU pass on v6e/v7x.
    TM = min(tm, _round_up(B, 8))
    Bp = _round_up(B, TM)
    if Bp != B:
        pad = Bp - B
        w = jnp.pad(w, ((0, pad), (0, 0)))
        c = jnp.pad(c, ((0, pad), (0, 0)))
    grid = (Bp // TM,)

    def row_spec(feat):
        return pl.BlockSpec((TM, feat), lambda i: (i, 0))

    def const_spec(arr):
        # Same block for every grid step -> DMA'd once, stays VMEM-resident.
        return pl.BlockSpec(arr.shape, lambda i: (0, 0))

    weights = [
        params["w1_w"], params["w1_c"], params["b1"],
        params["w2"], params["b2"],
        params["w3"], params["b3"],
        params["w4"], params["b4"],
        params["w5"], params["b5"],
        params["w6"], params["b6"],
    ]

    out = pl.pallas_call(
        generation_net_kernel,
        out_shape=jax.ShapeDtypeStruct((Bp, v_dim), jnp.float32),
        grid=grid,
        in_specs=[row_spec(w_dim), row_spec(n_classes)]
                 + [const_spec(a) for a in weights],
        out_specs=pl.BlockSpec((TM, v_dim), lambda i: (i, 0)),
        compiler_params=pltpu.CompilerParams(
            dimension_semantics=("parallel",),       # megacore sharding on v7x
            vmem_limit_bytes=32 * 1024 * 1024,
        ),
    )(w, c, *weights)

    return out[:B]


# ----------------------------------------------------------------------------
# Deterministic parameter init (PyTorch-style uniform(-1/sqrt(fan_in), ...)).
# Weights stored pre-transposed as (in, out); W1 pre-split into (w-part, c-part).
# ----------------------------------------------------------------------------
def init_params(key, w_dim, h_dim, v_dim, n_classes):
    din = w_dim + n_classes
    layer_dims = [
        ("1", din, 512), ("2", 512, 512), ("3", 512, h_dim),    # Ph_wc_mean
        ("4", h_dim, 512), ("5", 512, 512), ("6", 512, v_dim),  # Pv_h_mean
    ]
    params = {}
    keys = jax.random.split(key, 2 * len(layer_dims))
    for idx, (name, fan_in, fan_out) in enumerate(layer_dims):
        bound = 1.0 / float(fan_in) ** 0.5
        wk, bk = keys[2 * idx], keys[2 * idx + 1]
        W = jax.random.uniform(wk, (fan_in, fan_out), jnp.float32, -bound, bound)
        b = jax.random.uniform(bk, (1, fan_out), jnp.float32, -bound, bound)
        if name == "1":
            params["w1_w"] = W[:w_dim]
            params["w1_c"] = W[w_dim:]
        else:
            params[f"w{name}"] = W
        params[f"b{name}"] = b
    return params


def reference_forward(w, c, params):
    """Pure-JAX reference using the same bf16-weight / f32-accumulate numerics."""
    f32 = jnp.float32
    bf16 = jnp.bfloat16

    def dense(x, W, b):
        y = jnp.dot(x.astype(bf16), W.astype(bf16), preferred_element_type=f32)
        return y + b.astype(f32)

    x = jnp.concatenate([w, c], axis=-1)
    W1 = jnp.concatenate([params["w1_w"], params["w1_c"]], axis=0)
    t = jnp.maximum(dense(x, W1, params["b1"]), 0.0)
    t = jnp.maximum(dense(t, params["w2"], params["b2"]), 0.0)
    h = dense(t, params["w3"], params["b3"])
    t = jnp.maximum(dense(h, params["w4"], params["b4"]), 0.0)
    t = jnp.maximum(dense(t, params["w5"], params["b5"]), 0.0)
    return dense(t, params["w6"], params["b6"])


if __name__ == "__main__":
    # Small shapes consistent with the module's forward signature.
    B, w_dim, h_dim, v_dim, n_classes = 8, 32, 32, 16, 4

    key = jax.random.PRNGKey(0)
    k_param, k_w, k_c = jax.random.split(key, 3)

    params_f32 = init_params(k_param, w_dim, h_dim, v_dim, n_classes)
    # Weights/biases live in HBM as bf16 — halves the dominant weight-DMA cost.
    params = jax.tree_util.tree_map(lambda a: a.astype(jnp.bfloat16), params_f32)

    w = jax.random.normal(k_w, (B, w_dim), jnp.float32)
    # c is a class-probability / one-hot style input of width n_classes
    c = jax.nn.softmax(jax.random.normal(k_c, (B, n_classes), jnp.float32), axis=-1)

    v = jax.block_until_ready(generation_net_forward(w, c, params))
    v_ref = reference_forward(w, c, params)

    assert v.shape == (B, v_dim)
    assert bool(jnp.allclose(v, v_ref, atol=2e-2, rtol=2e-2)), "mismatch vs JAX reference"

    print("KERNEL_OK")
</pallas_src>

<mosaic_0001>
module attributes {stable_mosaic.version = 11 : i64} {
  func.func @generation_net_kernel(%arg0: i32, %arg1: memref<8x32xf32, #tpu.memory_space<vmem>>, %arg2: memref<8x4xf32, #tpu.memory_space<vmem>>, %arg3: memref<32x512xbf16, #tpu.memory_space<vmem>>, %arg4: memref<4x512xbf16, #tpu.memory_space<vmem>>, %arg5: memref<1x512xbf16, #tpu.memory_space<vmem>>, %arg6: memref<512x512xbf16, #tpu.memory_space<vmem>>, %arg7: memref<1x512xbf16, #tpu.memory_space<vmem>>, %arg8: memref<512x32xbf16, #tpu.memory_space<vmem>>, %arg9: memref<1x32xbf16, #tpu.memory_space<vmem>>, %arg10: memref<32x512xbf16, #tpu.memory_space<vmem>>, %arg11: memref<1x512xbf16, #tpu.memory_space<vmem>>, %arg12: memref<512x512xbf16, #tpu.memory_space<vmem>>, %arg13: memref<1x512xbf16, #tpu.memory_space<vmem>>, %arg14: memref<512x16xbf16, #tpu.memory_space<vmem>>, %arg15: memref<1x16xbf16, #tpu.memory_space<vmem>>, %arg16: memref<8x16xf32, #tpu.memory_space<vmem>>) attributes {dimension_semantics = [#tpu.dimension_semantics<parallel>], iteration_bounds = array<i64: 1>, scalar_prefetch = 0 : i64, scratch_operands = 0 : i64, tpu.core_type = #tpu.core_type<tc>, window_params = [{transform_indices = @transform_0, window_bounds = array<i64: 8, 32>}, {transform_indices = @transform_1, window_bounds = array<i64: 8, 4>}, {pipeline_mode = #tpu.pipeline_mode<synchronous>, transform_indices = @transform_2, window_bounds = array<i64: 32, 512>}, {pipeline_mode = #tpu.pipeline_mode<synchronous>, transform_indices = @transform_3, window_bounds = array<i64: 4, 512>}, {pipeline_mode = #tpu.pipeline_mode<synchronous>, transform_indices = @transform_4, window_bounds = array<i64: 1, 512>}, {pipeline_mode = #tpu.pipeline_mode<synchronous>, transform_indices = @transform_5, window_bounds = array<i64: 512, 512>}, {pipeline_mode = #tpu.pipeline_mode<synchronous>, transform_indices = @transform_6, window_bounds = array<i64: 1, 512>}, {pipeline_mode = #tpu.pipeline_mode<synchronous>, transform_indices = @transform_7, window_bounds = array<i64: 512, 32>}, {pipeline_mode = #tpu.pipeline_mode<synchronous>, transform_indices = @transform_8, window_bounds = array<i64: 1, 32>}, {pipeline_mode = #tpu.pipeline_mode<synchronous>, transform_indices = @transform_9, window_bounds = array<i64: 32, 512>}, {pipeline_mode = #tpu.pipeline_mode<synchronous>, transform_indices = @transform_10, window_bounds = array<i64: 1, 512>}, {pipeline_mode = #tpu.pipeline_mode<synchronous>, transform_indices = @transform_11, window_bounds = array<i64: 512, 512>}, {pipeline_mode = #tpu.pipeline_mode<synchronous>, transform_indices = @transform_12, window_bounds = array<i64: 1, 512>}, {pipeline_mode = #tpu.pipeline_mode<synchronous>, transform_indices = @transform_13, window_bounds = array<i64: 512, 16>}, {pipeline_mode = #tpu.pipeline_mode<synchronous>, transform_indices = @transform_14, window_bounds = array<i64: 1, 16>}, {transform_indices = @transform_15, window_bounds = array<i64: 8, 16>}]} {
    %c0 = arith.constant 0 : index
    %c0_0 = arith.constant 0 : index
    %0 = vector.load %arg1[%c0, %c0_0] : memref<8x32xf32, #tpu.memory_space<vmem>>, vector<8x32xf32>
    %1 = arith.truncf %0 : vector<8x32xf32> to vector<8x32xbf16>
    %c0_1 = arith.constant 0 : index
    %c0_2 = arith.constant 0 : index
    %2 = vector.load %arg3[%c0_1, %c0_2] : memref<32x512xbf16, #tpu.memory_space<vmem>>, vector<32x512xbf16>
    %cst = arith.constant dense<0.000000e+00> : vector<8x512xf32>
    %3 = tpu.matmul %1, %2, %cst {dimension_numbers = #tpu.dot_dimension_numbers<[1], [0], [0], [1], [0, 0, 1, 1], [], []>} : vector<8x32xbf16>, vector<32x512xbf16>, vector<8x512xf32> -> vector<8x512xf32>
    %c0_3 = arith.constant 0 : index
    %c0_4 = arith.constant 0 : index
    %4 = vector.load %arg2[%c0_3, %c0_4] : memref<8x4xf32, #tpu.memory_space<vmem>>, vector<8x4xf32>
    %5 = arith.truncf %4 : vector<8x4xf32> to vector<8x4xbf16>
    %c0_5 = arith.constant 0 : index
    %c0_6 = arith.constant 0 : index
    %6 = vector.load %arg4[%c0_5, %c0_6] : memref<4x512xbf16, #tpu.memory_space<vmem>>, vector<4x512xbf16>
    %cst_7 = arith.constant dense<0.000000e+00> : vector<8x512xf32>
    %7 = tpu.matmul %5, %6, %cst_7 {dimension_numbers = #tpu.dot_dimension_numbers<[1], [0], [0], [1], [0, 0, 1, 1], [], []>} : vector<8x4xbf16>, vector<4x512xbf16>, vector<8x512xf32> -> vector<8x512xf32>
    %8 = arith.addf %3, %7 : vector<8x512xf32>
    %c0_8 = arith.constant 0 : index
    %c0_9 = arith.constant 0 : index
    %9 = vector.load %arg5[%c0_8, %c0_9] : memref<1x512xbf16, #tpu.memory_space<vmem>>, vector<1x512xbf16>
    %10 = arith.extf %9 : vector<1x512xbf16> to vector<1x512xf32>
    %11 = vector.broadcast %10 : vector<1x512xf32> to vector<8x512xf32>
    %12 = arith.addf %8, %11 : vector<8x512xf32>
    %cst_10 = arith.constant 0.000000e+00 : f32
    %13 = vector.broadcast %cst_10 : f32 to vector<8x512xf32>
    %14 = arith.maximumf %12, %13 : vector<8x512xf32>
    %15 = arith.truncf %14 : vector<8x512xf32> to vector<8x512xbf16>
    %c0_11 = arith.constant 0 : index
    %c0_12 = arith.constant 0 : index
    %16 = vector.load %arg6[%c0_11, %c0_12] : memref<512x512xbf16, #tpu.memory_space<vmem>>, vector<512x512xbf16>
    %cst_13 = arith.constant dense<0.000000e+00> : vector<8x512xf32>
    %17 = tpu.matmul %15, %16, %cst_13 {dimension_numbers = #tpu.dot_dimension_numbers<[1], [0], [0], [1], [0, 0, 1, 1], [], []>} : vector<8x512xbf16>, vector<512x512xbf16>, vector<8x512xf32> -> vector<8x512xf32>
    %c0_14 = arith.constant 0 : index
    %c0_15 = arith.constant 0 : index
    %18 = vector.load %arg7[%c0_14, %c0_15] : memref<1x512xbf16, #tpu.memory_space<vmem>>, vector<1x512xbf16>
    %19 = arith.extf %18 : vector<1x512xbf16> to vector<1x512xf32>
    %20 = vector.broadcast %19 : vector<1x512xf32> to vector<8x512xf32>
    %21 = arith.addf %17, %20 : vector<8x512xf32>
    %cst_16 = arith.constant 0.000000e+00 : f32
    %22 = vector.broadcast %cst_16 : f32 to vector<8x512xf32>
    %23 = arith.maximumf %21, %22 : vector<8x512xf32>
    %24 = arith.truncf %23 : vector<8x512xf32> to vector<8x512xbf16>
    %c0_17 = arith.constant 0 : index
    %c0_18 = arith.constant 0 : index
    %25 = vector.load %arg8[%c0_17, %c0_18] : memref<512x32xbf16, #tpu.memory_space<vmem>>, vector<512x32xbf16>
    %cst_19 = arith.constant dense<0.000000e+00> : vector<8x32xf32>
    %26 = tpu.matmul %24, %25, %cst_19 {dimension_numbers = #tpu.dot_dimension_numbers<[1], [0], [0], [1], [0, 0, 1, 1], [], []>} : vector<8x512xbf16>, vector<512x32xbf16>, vector<8x32xf32> -> vector<8x32xf32>
    %c0_20 = arith.constant 0 : index
    %c0_21 = arith.constant 0 : index
    %27 = vector.load %arg9[%c0_20, %c0_21] : memref<1x32xbf16, #tpu.memory_space<vmem>>, vector<1x32xbf16>
    %28 = arith.extf %27 : vector<1x32xbf16> to vector<1x32xf32>
    %29 = vector.broadcast %28 : vector<1x32xf32> to vector<8x32xf32>
    %30 = arith.addf %26, %29 : vector<8x32xf32>
    %31 = arith.truncf %30 : vector<8x32xf32> to vector<8x32xbf16>
    %c0_22 = arith.constant 0 : index
    %c0_23 = arith.constant 0 : index
    %32 = vector.load %arg10[%c0_22, %c0_23] : memref<32x512xbf16, #tpu.memory_space<vmem>>, vector<32x512xbf16>
    %cst_24 = arith.constant dense<0.000000e+00> : vector<8x512xf32>
    %33 = tpu.matmul %31, %32, %cst_24 {dimension_numbers = #tpu.dot_dimension_numbers<[1], [0], [0], [1], [0, 0, 1, 1], [], []>} : vector<8x32xbf16>, vector<32x512xbf16>, vector<8x512xf32> -> vector<8x512xf32>
    %c0_25 = arith.constant 0 : index
    %c0_26 = arith.constant 0 : index
    %34 = vector.load %arg11[%c0_25, %c0_26] : memref<1x512xbf16, #tpu.memory_space<vmem>>, vector<1x512xbf16>
    %35 = arith.extf %34 : vector<1x512xbf16> to vector<1x512xf32>
    %36 = vector.broadcast %35 : vector<1x512xf32> to vector<8x512xf32>
    %37 = arith.addf %33, %36 : vector<8x512xf32>
    %cst_27 = arith.constant 0.000000e+00 : f32
    %38 = vector.broadcast %cst_27 : f32 to vector<8x512xf32>
    %39 = arith.maximumf %37, %38 : vector<8x512xf32>
    %40 = arith.truncf %39 : vector<8x512xf32> to vector<8x512xbf16>
    %c0_28 = arith.constant 0 : index
    %c0_29 = arith.constant 0 : index
    %41 = vector.load %arg12[%c0_28, %c0_29] : memref<512x512xbf16, #tpu.memory_space<vmem>>, vector<512x512xbf16>
    %cst_30 = arith.constant dense<0.000000e+00> : vector<8x512xf32>
    %42 = tpu.matmul %40, %41, %cst_30 {dimension_numbers = #tpu.dot_dimension_numbers<[1], [0], [0], [1], [0, 0, 1, 1], [], []>} : vector<8x512xbf16>, vector<512x512xbf16>, vector<8x512xf32> -> vector<8x512xf32>
    %c0_31 = arith.constant 0 : index
    %c0_32 = arith.constant 0 : index
    %43 = vector.load %arg13[%c0_31, %c0_32] : memref<1x512xbf16, #tpu.memory_space<vmem>>, vector<1x512xbf16>
    %44 = arith.extf %43 : vector<1x512xbf16> to vector<1x512xf32>
    %45 = vector.broadcast %44 : vector<1x512xf32> to vector<8x512xf32>
    %46 = arith.addf %42, %45 : vector<8x512xf32>
    %cst_33 = arith.constant 0.000000e+00 : f32
    %47 = vector.broadcast %cst_33 : f32 to vector<8x512xf32>
    %48 = arith.maximumf %46, %47 : vector<8x512xf32>
    %49 = arith.truncf %48 : vector<8x512xf32> to vector<8x512xbf16>
    %c0_34 = arith.constant 0 : index
    %c0_35 = arith.constant 0 : index
    %50 = vector.load %arg14[%c0_34, %c0_35] : memref<512x16xbf16, #tpu.memory_space<vmem>>, vector<512x16xbf16>
    %cst_36 = arith.constant dense<0.000000e+00> : vector<8x16xf32>
    %51 = tpu.matmul %49, %50, %cst_36 {dimension_numbers = #tpu.dot_dimension_numbers<[1], [0], [0], [1], [0, 0, 1, 1], [], []>} : vector<8x512xbf16>, vector<512x16xbf16>, vector<8x16xf32> -> vector<8x16xf32>
    %c0_37 = arith.constant 0 : index
    %c0_38 = arith.constant 0 : index
    %52 = vector.load %arg15[%c0_37, %c0_38] : memref<1x16xbf16, #tpu.memory_space<vmem>>, vector<1x16xbf16>
    %53 = arith.extf %52 : vector<1x16xbf16> to vector<1x16xf32>
    %54 = vector.broadcast %53 : vector<1x16xf32> to vector<8x16xf32>
    %55 = arith.addf %51, %54 : vector<8x16xf32>
    %c0_39 = arith.constant 0 : index
    %c0_40 = arith.constant 0 : index
    %56 = vector.load %arg16[%c0_39, %c0_40] : memref<8x16xf32, #tpu.memory_space<vmem>>, vector<8x16xf32>
    tpu.vector_store %arg16[%c0_39, %c0_40], %55 {strides = array<i32>} : memref<8x16xf32, #tpu.memory_space<vmem>>, vector<8x16xf32>,
    return
  }
  func.func @transform_0(%arg0: i32) -> (i32, i32) {
    %c0_i32 = arith.constant 0 : i32
    %c0_i32_0 = arith.constant 0 : i32
    return %arg0, %c0_i32 : i32, i32
  }
  func.func @transform_1(%arg0: i32) -> (i32, i32) {
    %c0_i32 = arith.constant 0 : i32
    %c0_i32_0 = arith.constant 0 : i32
    return %arg0, %c0_i32 : i32, i32
  }
  func.func @transform_2(%arg0: i32) -> (i32, i32) {
    %c0_i32 = arith.constant 0 : i32
    %c0_i32_0 = arith.constant 0 : i32
    %c0_i32_1 = arith.constant 0 : i32
    return %c0_i32, %c0_i32_0 : i32, i32
  }
  func.func @transform_3(%arg0: i32) -> (i32, i32) {
    %c0_i32 = arith.constant 0 : i32
    %c0_i32_0 = arith.constant 0 : i32
    %c0_i32_1 = arith.constant 0 : i32
    return %c0_i32, %c0_i32_0 : i32, i32
  }
  func.func @transform_4(%arg0: i32) -> (i32, i32) {
    %c0_i32 = arith.constant 0 : i32
    %c0_i32_0 = arith.constant 0 : i32
    %c0_i32_1 = arith.constant 0 : i32
    return %c0_i32, %c0_i32_0 : i32, i32
  }
  func.func @transform_5(%arg0: i32) -> (i32, i32) {
    %c0_i32 = arith.constant 0 : i32
    %c0_i32_0 = arith.constant 0 : i32
    %c0_i32_1 = arith.constant 0 : i32
    return %c0_i32, %c0_i32_0 : i32, i32
  }
  func.func @transform_6(%arg0: i32) -> (i32, i32) {
    %c0_i32 = arith.constant 0 : i32
    %c0_i32_0 = arith.constant 0 : i32
    %c0_i32_1 = arith.constant 0 : i32
    return %c0_i32, %c0_i32_0 : i32, i32
  }
  func.func @transform_7(%arg0: i32) -> (i32, i32) {
    %c0_i32 = arith.constant 0 : i32
    %c0_i32_0 = arith.constant 0 : i32
    %c0_i32_1 = arith.constant 0 : i32
    return %c0_i32, %c0_i32_0 : i32, i32
  }
  func.func @transform_8(%arg0: i32) -> (i32, i32) {
    %c0_i32 = arith.constant 0 : i32
    %c0_i32_0 = arith.constant 0 : i32
    %c0_i32_1 = arith.constant 0 : i32
    return %c0_i32, %c0_i32_0 : i32, i32
  }
  func.func @transform_9(%arg0: i32) -> (i32, i32) {
    %c0_i32 = arith.constant 0 : i32
    %c0_i32_0 = arith.constant 0 : i32
    %c0_i32_1 = arith.constant 0 : i32
    return %c0_i32, %c0_i32_0 : i32, i32
  }
  func.func @transform_10(%arg0: i32) -> (i32, i32) {
    %c0_i32 = arith.constant 0 : i32
    %c0_i32_0 = arith.constant 0 : i32
    %c0_i32_1 = arith.constant 0 : i32
    return %c0_i32, %c0_i32_0 : i32, i32
  }
  func.func @transform_11(%arg0: i32) -> (i32, i32) {
    %c0_i32 = arith.constant 0 : i32
    %c0_i32_0 = arith.constant 0 : i32
    %c0_i32_1 = arith.constant 0 : i32
    return %c0_i32, %c0_i32_0 : i32, i32
  }
  func.func @transform_12(%arg0: i32) -> (i32, i32) {
    %c0_i32 = arith.constant 0 : i32
    %c0_i32_0 = arith.constant 0 : i32
    %c0_i32_1 = arith.constant 0 : i32
    return %c0_i32, %c0_i32_0 : i32, i32
  }
  func.func @transform_13(%arg0: i32) -> (i32, i32) {
    %c0_i32 = arith.constant 0 : i32
    %c0_i32_0 = arith.constant 0 : i32
    %c0_i32_1 = arith.constant 0 : i32
    return %c0_i32, %c0_i32_0 : i32, i32
  }
  func.func @transform_14(%arg0: i32) -> (i32, i32) {
    %c0_i32 = arith.constant 0 : i32
    %c0_i32_0 = arith.constant 0 : i32
    %c0_i32_1 = arith.constant 0 : i32
    return %c0_i32, %c0_i32_0 : i32, i32
  }
  func.func @transform_15(%arg0: i32) -> (i32, i32) {
    %c0_i32 = arith.constant 0 : i32
    %c0_i32_0 = arith.constant 0 : i32
    return %arg0, %c0_i32 : i32, i32
  }
}

</mosaic_0001>

<llo_original>
// kernel: tpu_custom_call.1
$region0: #{tpu_custom_call.1}
  #allocation0 [shape = 'u32[]', space=smem, size = 0x4, offset = 0x4, fixed_abs, tag = 'smem constant byte address 0x4 - core index']
  #allocation1 [shape = 'u32[144,128]{1,0:T(1,128)}', space=vmem, size = 0x12000, scoped, tag = 'internal scratch']
  %s0 = inlined_call_operand.vmem [shape: f32[8,32], index: 0, kind: input, shape index: {}]
  %s1 = inlined_call_operand.vmem [shape: f32[8,4], index: 1, kind: input, shape index: {}]
  %s2 = inlined_call_operand.vmem [shape: bf16[32,512], index: 2, kind: input, shape index: {}]
  %s3 = inlined_call_operand.vmem [shape: bf16[4,512], index: 3, kind: input, shape index: {}]
  %s4 = inlined_call_operand.vmem [shape: bf16[1,512], index: 4, kind: input, shape index: {}]
  %s5 = inlined_call_operand.hbm [shape: bf16[512,512], index: 5, kind: input, shape index: {}]
  %s6 = inlined_call_operand.vmem [shape: bf16[1,512], index: 6, kind: input, shape index: {}]
  %s7 = inlined_call_operand.vmem [shape: bf16[512,32], index: 7, kind: input, shape index: {}]
  %s8 = inlined_call_operand.vmem [shape: bf16[1,32], index: 8, kind: input, shape index: {}]
  %s9 = inlined_call_operand.vmem [shape: bf16[32,512], index: 9, kind: input, shape index: {}]
  %s10 = inlined_call_operand.vmem [shape: bf16[1,512], index: 10, kind: input, shape index: {}]
  %s11 = inlined_call_operand.hbm [shape: bf16[512,512], index: 11, kind: input, shape index: {}]
  %s12 = inlined_call_operand.vmem [shape: bf16[1,512], index: 12, kind: input, shape index: {}]
  %s13 = inlined_call_operand.vmem [shape: bf16[512,16], index: 13, kind: input, shape index: {}]
  %s14 = inlined_call_operand.vmem [shape: bf16[1,16], index: 14, kind: input, shape index: {}]
  %s15 = inlined_call_operand.hbm [shape: f32[8,16], index: 15, kind: output, shape index: {}]
  %s16 = sld [smem:[#allocation0]]
  $region78: #{tpu_custom_call.1} parent=0
    _
  %s18 = ssub.s32 1, %s16
  %s19 = scalar_select 0, %s18, %s16
  $region1: #{tpu_custom_call.1} parent=0
    #allocation2 [shape = 'u8[524288]{0}', space=vmem, size = 0x80000, scoped, tag = 'input window, operand 5, single buffered']
    #allocation3 [shape = 's32[1]{0}', space=sflag, size = 0x4, scoped, tag = 'scoped memory for tpu_custom_call.1']
    #allocation4 [shape = 's32[1]{0}', space=sflag, size = 0x4, scoped, tag = 'scoped memory for tpu_custom_call.1']
    #allocation5 [shape = 'u8[524288]{0}', space=vmem, size = 0x80000, scoped, tag = 'input window, operand 11, single buffered']
    #allocation6 [shape = 's32[1]{0}', space=sflag, size = 0x4, scoped, tag = 'scoped memory for tpu_custom_call.1']
    #allocation7 [shape = 'u8[4096]{0}', space=vmem, size = 0x1000, scoped, tag = 'output window, operand 0, single buffered']
    %20 = vsyncpa [#allocation3], 0
    %21 = vsyncpa [#allocation6], 0
    %22 = vsyncpa [#allocation4], 0
    // Predicated region
    $region2: #{tpu_custom_call.1} parent=1 // pred_check
      _
    $region3: #{tpu_custom_call.1} parent=1 // pred_check_branch
      %24 = sbr.rel (0) target = $region5
    $region4: #{tpu_custom_call.1} parent=1 // pred_region
      _
    $region5: #{tpu_custom_call.1} parent=1 // pred_fallthru
      _
    // Predicated region
    $region6: #{tpu_custom_call.1} parent=1 // pred_check
      _
    $region7: #{tpu_custom_call.1} parent=1 // pred_check_branch
      %26 = sbr.rel (0) target = $region9
    $region8: #{tpu_custom_call.1} parent=1 // pred_region
      _
    $region9: #{tpu_custom_call.1} parent=1 // pred_fallthru
      _
    // Predicated region
    $region10: #{tpu_custom_call.1} parent=1 // pred_check
      _
    $region11: #{tpu_custom_call.1} parent=1 // pred_check_branch
      %28 = sbr.rel (0) target = $region13
    $region12: #{tpu_custom_call.1} parent=1 // pred_region
      _
    $region13: #{tpu_custom_call.1} parent=1 // pred_fallthru
      _
    // Predicated region
    $region14: #{tpu_custom_call.1} parent=1 // pred_check
      _
    $region15: #{tpu_custom_call.1} parent=1 // pred_check_branch
      %30 = sbr.rel (0) target = $region17
    $region16: #{tpu_custom_call.1} parent=1 // pred_region
      _
    $region17: #{tpu_custom_call.1} parent=1 // pred_fallthru
      _
    // Predicated region
    $region18: #{tpu_custom_call.1} parent=1 // pred_check
      _
    $region19: #{tpu_custom_call.1} parent=1 // pred_check_branch
      %32 = sbr.rel (0) target = $region21
    $region20: #{tpu_custom_call.1} parent=1 // pred_region
      _
    $region21: #{tpu_custom_call.1} parent=1 // pred_fallthru
      _
    // Predicated region
    $region22: #{tpu_custom_call.1} parent=1 // pred_check
      _
    $region23: #{tpu_custom_call.1} parent=1 // pred_check_branch
      %34 = sbr.rel (0) target = $region25
    $region24: #{tpu_custom_call.1} parent=1 // pred_region
      %s36 = ssub.s32 16384, 16384
      %37 = vsyncadd [#allocation3], %s36
      %s38 = sshll.u32 [#allocation2], 4
      %s39 = int_to_ptr.vmem [resolvable:$true] %s38
      %44 = dma.hbm_to_vmem [thread:$0]  %s5, 16384, %s39, [#allocation3], 256, 256, 16
    $region25: #{tpu_custom_call.1} parent=1 // pred_fallthru
      _
    // Predicated region
    $region26: #{tpu_custom_call.1} parent=1 // pred_check
      _
    $region27: #{tpu_custom_call.1} parent=1 // pred_check_branch
      %46 = sbr.rel (0) target = $region29
    $region28: #{tpu_custom_call.1} parent=1 // pred_region
      _
    $region29: #{tpu_custom_call.1} parent=1 // pred_fallthru
      _
    // Predicated region
    $region30: #{tpu_custom_call.1} parent=1 // pred_check
      _
    $region31: #{tpu_custom_call.1} parent=1 // pred_check_branch
      %48 = sbr.rel (0) target = $region33
    $region32: #{tpu_custom_call.1} parent=1 // pred_region
      _
    $region33: #{tpu_custom_call.1} parent=1 // pred_fallthru
      _
    // Predicated region
    $region34: #{tpu_custom_call.1} parent=1 // pred_check
      _
    $region35: #{tpu_custom_call.1} parent=1 // pred_check_branch
      %50 = sbr.rel (0) target = $region37
    $region36: #{tpu_custom_call.1} parent=1 // pred_region
      _
    $region37: #{tpu_custom_call.1} parent=1 // pred_fallthru
      _
    // Predicated region
    $region38: #{tpu_custom_call.1} parent=1 // pred_check
      _
    $region39: #{tpu_custom_call.1} parent=1 // pred_check_branch
      %52 = sbr.rel (0) target = $region41
    $region40: #{tpu_custom_call.1} parent=1 // pred_region
      _
    $region41: #{tpu_custom_call.1} parent=1 // pred_fallthru
      _
    // Predicated region
    $region42: #{tpu_custom_call.1} parent=1 // pred_check
      _
    $region43: #{tpu_custom_call.1} parent=1 // pred_check_branch
      %54 = sbr.rel (0) target = $region45
    $region44: #{tpu_custom_call.1} parent=1 // pred_region
      _
    $region45: #{tpu_custom_call.1} parent=1 // pred_fallthru
      _
    // Predicated region
    $region46: #{tpu_custom_call.1} parent=1 // pred_check
      _
    $region47: #{tpu_custom_call.1} parent=1 // pred_check_branch
      %56 = sbr.rel (0) target = $region49
    $region48: #{tpu_custom_call.1} parent=1 // pred_region
      %s58 = ssub.s32 16384, 16384
      %59 = vsyncadd [#allocation6], %s58
      %s60 = sshll.u32 [#allocation5], 4
      %s61 = int_to_ptr.vmem [resolvable:$true] %s60
      %66 = dma.hbm_to_vmem [thread:$0]  %s11, 16384, %s61, [#allocation6], 256, 256, 16
    $region49: #{tpu_custom_call.1} parent=1 // pred_fallthru
      _
    // Predicated region
    $region50: #{tpu_custom_call.1} parent=1 // pred_check
      _
    $region51: #{tpu_custom_call.1} parent=1 // pred_check_branch
      %68 = sbr.rel (0) target = $region53
    $region52: #{tpu_custom_call.1} parent=1 // pred_region
      _
    $region53: #{tpu_custom_call.1} parent=1 // pred_fallthru
      _
    // Predicated region
    $region54: #{tpu_custom_call.1} parent=1 // pred_check
      _
    $region55: #{tpu_custom_call.1} parent=1 // pred_check_branch
      %70 = sbr.rel (0) target = $region57
    $region56: #{tpu_custom_call.1} parent=1 // pred_region
      _
    $region57: #{tpu_custom_call.1} parent=1 // pred_fallthru
      _
    // Predicated region
    $region58: #{tpu_custom_call.1} parent=1 // pred_check
      _
    $region59: #{tpu_custom_call.1} parent=1 // pred_check_branch
      %72 = sbr.rel (0) target = $region61
    $region60: #{tpu_custom_call.1} parent=1 // pred_region
      _
    $region61: #{tpu_custom_call.1} parent=1 // pred_fallthru
      _
    // Predicated region
    $region62: #{tpu_custom_call.1} parent=1 // pred_check
      _
    $region63: #{tpu_custom_call.1} parent=1 // pred_check_branch
      %74 = sbr.rel (0) target = $region65
    $region64: #{tpu_custom_call.1} parent=1 // pred_region
      %75 = dma.done [#allocation3], 16384
    $region65: #{tpu_custom_call.1} parent=1 // pred_fallthru
      _
    // Predicated region
    $region66: #{tpu_custom_call.1} parent=1 // pred_check
      _
    $region67: #{tpu_custom_call.1} parent=1 // pred_check_branch
      %77 = sbr.rel (0) target = $region69
    $region68: #{tpu_custom_call.1} parent=1 // pred_region
      %78 = dma.done [#allocation6], 16384
    $region69: #{tpu_custom_call.1} parent=1 // pred_fallthru
      _
    %v80 = vld [vmem:[%s0] sm:$0xff]
    %v81 = vpack.c.bf16 %v80, %v80
    %v82 = vld [vmem:[%s2] sm:$0xff]
    %v83 = vld [vmem:[%s2 + $0x8] sm:$0xff]
    %v84 = vld [vmem:[%s2 + $0x10] sm:$0xff]
    %v85 = vld [vmem:[%s2 + $0x18] sm:$0xff]
    %v86 = vld [vmem:[%s2 + $0x20] sm:$0xff]
    %v87 = vld [vmem:[%s2 + $0x28] sm:$0xff]
    %v88 = vld [vmem:[%s2 + $0x30] sm:$0xff]
    %v89 = vld [vmem:[%s2 + $0x38] sm:$0xff]
    %v90 = vld [vmem:[%s1] sm:$0xff]
    %v91 = vpack.c.bf16 %v90, %v90
    %v92 = vld [vmem:[%s3] sm:$0xff]
    %v94 = vcombine.high %v92, %v92
    %v96 = vunpack.c.l.s4 1983009808
    %v97 = vunpack.c.0.s8 %v96
    %v98 = vlaneseq
    %v99 = vshrl.u32 %v98, 7
    %v100 = vsub.s32 %v97, %v99
    %v101 = vrot.slane %v92, %v100
    %v103 = vunpack.c.l.s4 1983009808
    %v104 = vunpack.c.0.s8 %v103
    %v105 = vlaneseq
    %v106 = vshrl.u32 %v105, 7
    %v107 = vsub.s32 %v104, %v106
    %v108 = vrot.slane %v94, %v107
    %v109 = vcombine.high %v101, %v101
    %v110 = vcombine.high %v108, %v108
    %vm111 = vcmask 31744
    %v113 = vsel %vm111, %v91, 0
    %vm115 = vcmask 1041408
    %v117 = vsel %vm115, %v101, 0
    %v120 = vsel %vm115, %v109, 0
    %v123 = vsel %vm115, %v108, 0
    %v126 = vsel %vm115, %v110, 0
    %128 = vmatprep.subr.bf16.mxu0 0
    %129 = vmatpush1.bf16.msra.mxu0 0
    %130 = vmatprep.subr.bf16.mxu0 0
    %131 = vmatpush1.bf16.msra.mxu0 0
    %132 = vmatprep.subr.bf16.mxu0 0
    %133 = vmatpush1.bf16.msra.mxu0 0
    %134 = vmatprep.subr.bf16.mxu0 0
    %135 = vmatpush1.bf16.msra.mxu0 0
    %136 = vmatprep.subr.bf16.mxu0 0
    %137 = vmatpush1.bf16.msra.mxu0 0
    %138 = vmatprep.subr.bf16.mxu0 0
    %139 = vmatpush1.bf16.msra.mxu0 0
    %140 = vmatprep.subr.bf16.mxu0 0
    %141 = vmatpush1.bf16.msra.mxu0 0
    %142 = vmatprep.subr.bf16.mxu0 %v120
    %143 = vmatpush1.bf16.msra.mxu0 %v117
    %144 = vmatprep.subr.bf16.mxu0 0
    %145 = vmatpush2.bf16.msra.mxu0 0
    %146 = vmatprep.subr.bf16.mxu0 0
    %147 = vmatpush2.bf16.msra.mxu0 0
    %148 = vmatprep.subr.bf16.mxu0 0
    %149 = vmatpush2.bf16.msra.mxu0 0
    %150 = vmatprep.subr.bf16.mxu0 0
    %151 = vmatpush2.bf16.msra.mxu0 0
    %152 = vmatprep.subr.bf16.mxu0 0
    %153 = vmatpush2.bf16.msra.mxu0 0
    %154 = vmatprep.subr.bf16.mxu0 0
    %155 = vmatpush2.bf16.msra.mxu0 0
    %156 = vmatprep.subr.bf16.mxu0 0
    %157 = vmatpush2.bf16.msra.mxu0 0
    %158 = vmatprep.subr.bf16.mxu0 0
    %159 = vmatpush2.bf16.msra.mxu0 0
    %160 = vmatprep.mubr.bf16.mxu0 0
    %161 = vmatmul.mubr.bf16.gmra.mxu0 %v113
    %v162 = vpop.f32.mrf.mxu0
    %v163 = vadd.f32 0.0, %v162
    %v164 = vpop.f32.mrf.mxu0
    %v165 = vadd.f32 0.0, %v164
    %v166 = vpop.f32.mrf.mxu0
    %v167 = vpop.f32.mrf.mxu0
    %168 = vdwg.mxu0
    %169 = vmatprep.subr.bf16.mxu0 0
    %170 = vmatpush1.bf16.msra.mxu0 0
    %171 = vmatprep.subr.bf16.mxu0 0
    %172 = vmatpush1.bf16.msra.mxu0 0
    %173 = vmatprep.subr.bf16.mxu0 0
    %174 = vmatpush1.bf16.msra.mxu0 0
    %175 = vmatprep.subr.bf16.mxu0 0
    %176 = vmatpush1.bf16.msra.mxu0 0
    %177 = vmatprep.subr.bf16.mxu0 0
    %178 = vmatpush1.bf16.msra.mxu0 0
    %179 = vmatprep.subr.bf16.mxu0 0
    %180 = vmatpush1.bf16.msra.mxu0 0
    %181 = vmatprep.subr.bf16.mxu0 0
    %182 = vmatpush1.bf16.msra.mxu0 0
    %183 = vmatprep.subr.bf16.mxu0 %v126
    %184 = vmatpush1.bf16.msra.mxu0 %v123
    %185 = vmatprep.subr.bf16.mxu0 0
    %186 = vmatpush2.bf16.msra.mxu0 0
    %187 = vmatprep.subr.bf16.mxu0 0
    %188 = vmatpush2.bf16.msra.mxu0 0
    %189 = vmatprep.subr.bf16.mxu0 0
    %190 = vmatpush2.bf16.msra.mxu0 0
    %191 = vmatprep.subr.bf16.mxu0 0
    %192 = vmatpush2.bf16.msra.mxu0 0
    %193 = vmatprep.subr.bf16.mxu0 0
    %194 = vmatpush2.bf16.msra.mxu0 0
    %195 = vmatprep.subr.bf16.mxu0 0
    %196 = vmatpush2.bf16.msra.mxu0 0
    %197 = vmatprep.subr.bf16.mxu0 0
    %198 = vmatpush2.bf16.msra.mxu0 0
    %199 = vmatprep.subr.bf16.mxu0 0
    %200 = vmatpush2.bf16.msra.mxu0 0
    %201 = vmatprep.mubr.bf16.mxu0 0
    %202 = vmatmul.mubr.bf16.gmra.mxu0 %v113
    %v203 = vpop.f32.mrf.mxu0
    %v204 = vadd.f32 0.0, %v203
    %v205 = vpop.f32.mrf.mxu0
    %v206 = vadd.f32 0.0, %v205
    %v207 = vpop.f32.mrf.mxu0
    %v208 = vpop.f32.mrf.mxu0
    %209 = vdwg.mxu0
    %v218 = vunpack.c.l.b16 %v82
    %v219 = vunpack.c.h.b16 %v82
    %v220 = vunpack.c.l.b16 %v83
    %v221 = vunpack.c.h.b16 %v83
    %v222 = vunpack.c.l.b16 %v84
    %v223 = vunpack.c.h.b16 %v84
    %v224 = vunpack.c.l.b16 %v85
    %v225 = vunpack.c.h.b16 %v85
    %v226 = vunpack.c.l.b16 %v86
    %v227 = vunpack.c.h.b16 %v86
    %v228 = vunpack.c.l.b16 %v87
    %v229 = vunpack.c.h.b16 %v87
    %v230 = vunpack.c.l.b16 %v88
    %v231 = vunpack.c.h.b16 %v88
    %v232 = vunpack.c.l.b16 %v89
    %v233 = vunpack.c.h.b16 %v89
    %v234 = vpack.c.b16 %v222, %v218
    %v235 = vpack.c.b16 %v223, %v219
    %v236 = vpack.c.b16 %v224, %v220
    %v237 = vpack.c.b16 %v225, %v221
    %v238 = vpack.c.b16 %v230, %v226
    %v239 = vpack.c.b16 %v231, %v227
    %v240 = vpack.c.b16 %v232, %v228
    %v241 = vpack.c.b16 %v233, %v229
    %vm250 = vcmask 261120
    %v252 = vsel %vm250, %v81, 0
    %254 = vmatprep.subr.bf16.mxu0 0
    %255 = vmatpush1.bf16.msra.mxu0 0
    %256 = vmatprep.subr.bf16.mxu0 0
    %257 = vmatpush1.bf16.msra.mxu0 0
    %258 = vmatprep.subr.bf16.mxu0 0
    %259 = vmatpush1.bf16.msra.mxu0 0
    %260 = vmatprep.subr.bf16.mxu0 0
    %261 = vmatpush1.bf16.msra.mxu0 0
    %262 = vmatprep.subr.bf16.mxu0 0
    %263 = vmatpush1.bf16.msra.mxu0 0
    %264 = vmatprep.subr.bf16.mxu0 0
    %265 = vmatpush1.bf16.msra.mxu0 0
    %266 = vmatprep.subr.bf16.mxu0 %v239
    %267 = vmatpush1.bf16.msra.mxu0 %v238
    %268 = vmatprep.subr.bf16.mxu0 %v235
    %269 = vmatpush1.bf16.msra.mxu0 %v234
    %270 = vmatprep.subr.bf16.mxu0 0
    %271 = vmatpush2.bf16.msra.mxu0 0
    %272 = vmatprep.subr.bf16.mxu0 0
    %273 = vmatpush2.bf16.msra.mxu0 0
    %274 = vmatprep.subr.bf16.mxu0 0
    %275 = vmatpush2.bf16.msra.mxu0 0
    %276 = vmatprep.subr.bf16.mxu0 0
    %277 = vmatpush2.bf16.msra.mxu0 0
    %278 = vmatprep.subr.bf16.mxu0 0
    %279 = vmatpush2.bf16.msra.mxu0 0
    %280 = vmatprep.subr.bf16.mxu0 0
    %281 = vmatpush2.bf16.msra.mxu0 0
    %282 = vmatprep.subr.bf16.mxu0 0
    %283 = vmatpush2.bf16.msra.mxu0 0
    %284 = vmatprep.subr.bf16.mxu0 0
    %285 = vmatpush2.bf16.msra.mxu0 0
    %286 = vmatprep.mubr.bf16.mxu0 0
    %287 = vmatmul.mubr.bf16.gmra.mxu0 %v252
    %v288 = vpop.f32.mrf.mxu0
    %v289 = vadd.f32 %v163, %v288
    %v290 = vpop.f32.mrf.mxu0
    %v291 = vadd.f32 %v165, %v290
    %v292 = vpop.f32.mrf.mxu0
    %v293 = vpop.f32.mrf.mxu0
    %294 = vdwg.mxu0
    %295 = vmatprep.subr.bf16.mxu0 0
    %296 = vmatpush1.bf16.msra.mxu0 0
    %297 = vmatprep.subr.bf16.mxu0 0
    %298 = vmatpush1.bf16.msra.mxu0 0
    %299 = vmatprep.subr.bf16.mxu0 0
    %300 = vmatpush1.bf16.msra.mxu0 0
    %301 = vmatprep.subr.bf16.mxu0 0
    %302 = vmatpush1.bf16.msra.mxu0 0
    %303 = vmatprep.subr.bf16.mxu0 0
    %304 = vmatpush1.bf16.msra.mxu0 0
    %305 = vmatprep.subr.bf16.mxu0 0
    %306 = vmatpush1.bf16.msra.mxu0 0
    %307 = vmatprep.subr.bf16.mxu0 %v241
    %308 = vmatpush1.bf16.msra.mxu0 %v240
    %309 = vmatprep.subr.bf16.mxu0 %v237
    %310 = vmatpush1.bf16.msra.mxu0 %v236
    %311 = vmatprep.subr.bf16.mxu0 0
    %312 = vmatpush2.bf16.msra.mxu0 0
    %313 = vmatprep.subr.bf16.mxu0 0
    %314 = vmatpush2.bf16.msra.mxu0 0
    %315 = vmatprep.subr.bf16.mxu0 0
    %316 = vmatpush2.bf16.msra.mxu0 0
    %317 = vmatprep.subr.bf16.mxu0 0
    %318 = vmatpush2.bf16.msra.mxu0 0
    %319 = vmatprep.subr.bf16.mxu0 0
    %320 = vmatpush2.bf16.msra.mxu0 0
    %321 = vmatprep.subr.bf16.mxu0 0
    %322 = vmatpush2.bf16.msra.mxu0 0
    %323 = vmatprep.subr.bf16.mxu0 0
    %324 = vmatpush2.bf16.msra.mxu0 0
    %325 = vmatprep.subr.bf16.mxu0 0
    %326 = vmatpush2.bf16.msra.mxu0 0
    %327 = vmatprep.mubr.bf16.mxu0 0
    %328 = vmatmul.mubr.bf16.gmra.mxu0 %v252
    %v329 = vpop.f32.mrf.mxu0
    %v330 = vadd.f32 %v204, %v329
    %v331 = vpop.f32.mrf.mxu0
    %v332 = vadd.f32 %v206, %v331
    %v333 = vpop.f32.mrf.mxu0
    %v334 = vpop.f32.mrf.mxu0
    %335 = vdwg.mxu0
    %v336 = vld [vmem:[%s4] sm:$0xf]
    %v337 = vunpack.c.l.bf16 %v336
    %v339 = vlaneseq
    %v340 = vshrl.u32 %v339, 7
    %v341 = vsub.s32 0, %v340
    %v342 = vrot.slane %v337, %v341
    %v343 = vlaneseq
    %v344 = vshrl.u32 %v343, 7
    %v345 = vsub.s32 2, %v344
    %v346 = vrot.slane %v337, %v345
    %v347 = vlaneseq
    %v348 = vshrl.u32 %v347, 7
    %v349 = vsub.s32 4, %v348
    %v350 = vrot.slane %v337, %v349
    %v351 = vlaneseq
    %v352 = vshrl.u32 %v351, 7
    %v353 = vsub.s32 6, %v352
    %v354 = vrot.slane %v337, %v353
    %v359 = vlaneseq
    %v360 = vshrl.u32 %v359, 7
    %v361 = vsub.s32 0, %v360
    %v362 = vrot.slane %v342, %v361
    %v363 = vlaneseq
    %v364 = vshrl.u32 %v363, 7
    %v365 = vsub.s32 0, %v364
    %v366 = vrot.slane %v346, %v365
    %v367 = vlaneseq
    %v368 = vshrl.u32 %v367, 7
    %v369 = vsub.s32 0, %v368
    %v370 = vrot.slane %v350, %v369
    %v371 = vlaneseq
    %v372 = vshrl.u32 %v371, 7
    %v373 = vsub.s32 0, %v372
    %v374 = vrot.slane %v354, %v373
    %v375 = vadd.f32 %v289, %v362
    %v376 = vadd.f32 %v291, %v366
    %v377 = vadd.f32 %v330, %v370
    %v378 = vadd.f32 %v332, %v374
    %v379 = vmax.f32 %v375, 0.0
    %v380 = vmax.f32 %v376, 0.0
    %v381 = vmax.f32 %v377, 0.0
    %v382 = vmax.f32 %v378, 0.0
    %v383 = vpack.c.bf16 %v379, %v379
    %v384 = vpack.c.bf16 %v380, %v380
    %v385 = vpack.c.bf16 %v381, %v381
    %v386 = vpack.c.bf16 %v382, %v382
    %v387 = vld [vmem:[#allocation2] sm:$0xff]
    %v388 = vld [vmem:[#allocation2 + $0x8] sm:$0xff]
    %v389 = vld [vmem:[#allocation2 + $0x10] sm:$0xff]
    %v390 = vld [vmem:[#allocation2 + $0x18] sm:$0xff]
    %v391 = vld [vmem:[#allocation2 + $0x20] sm:$0xff]
    %v392 = vld [vmem:[#allocation2 + $0x28] sm:$0xff]
    %v393 = vld [vmem:[#allocation2 + $0x30] sm:$0xff]
    %v394 = vld [vmem:[#allocation2 + $0x38] sm:$0xff]
    %v395 = vld [vmem:[#allocation2 + $0x40] sm:$0xff]
    %v396 = vld [vmem:[#allocation2 + $0x48] sm:$0xff]
    %v397 = vld [vmem:[#allocation2 + $0x50] sm:$0xff]
    %v398 = vld [vmem:[#allocation2 + $0x58] sm:$0xff]
    %v399 = vld [vmem:[#allocation2 + $0x60] sm:$0xff]
    %v400 = vld [vmem:[#allocation2 + $0x68] sm:$0xff]
    %v401 = vld [vmem:[#allocation2 + $0x70] sm:$0xff]
    %v402 = vld [vmem:[#allocation2 + $0x78] sm:$0xff]
    %v403 = vld [vmem:[#allocation2 + $0x80] sm:$0xff]
    %v404 = vld [vmem:[#allocation2 + $0x88] sm:$0xff]
    %v405 = vld [vmem:[#allocation2 + $0x90] sm:$0xff]
    %v406 = vld [vmem:[#allocation2 + $0x98] sm:$0xff]
    %v407 = vld [vmem:[#allocation2 + $0xa0] sm:$0xff]
    %v408 = vld [vmem:[#allocation2 + $0xa8] sm:$0xff]
    %v409 = vld [vmem:[#allocation2 + $0xb0] sm:$0xff]
    %v410 = vld [vmem:[#allocation2 + $0xb8] sm:$0xff]
    %v411 = vld [vmem:[#allocation2 + $0xc0] sm:$0xff]
    %v412 = vld [vmem:[#allocation2 + $0xc8] sm:$0xff]
    %v413 = vld [vmem:[#allocation2 + $0xd0] sm:$0xff]
    %v414 = vld [vmem:[#allocation2 + $0xd8] sm:$0xff]
    %v415 = vld [vmem:[#allocation2 + $0xe0] sm:$0xff]
    %v416 = vld [vmem:[#allocation2 + $0xe8] sm:$0xff]
    %v417 = vld [vmem:[#allocation2 + $0xf0] sm:$0xff]
    %v418 = vld [vmem:[#allocation2 + $0xf8] sm:$0xff]
    %v419 = vld [vmem:[#allocation2 + $0x100] sm:$0xff]
    %v420 = vld [vmem:[#allocation2 + $0x108] sm:$0xff]
    %v421 = vld [vmem:[#allocation2 + $0x110] sm:$0xff]
    %v422 = vld [vmem:[#allocation2 + $0x118] sm:$0xff]
    %v423 = vld [vmem:[#allocation2 + $0x120] sm:$0xff]
    %v424 = vld [vmem:[#allocation2 + $0x128] sm:$0xff]
    %v425 = vld [vmem:[#allocation2 + $0x130] sm:$0xff]
    %v426 = vld [vmem:[#allocation2 + $0x138] sm:$0xff]
    %v427 = vld [vmem:[#allocation2 + $0x140] sm:$0xff]
    %v428 = vld [vmem:[#allocation2 + $0x148] sm:$0xff]
    %v429 = vld [vmem:[#allocation2 + $0x150] sm:$0xff]
    %v430 = vld [vmem:[#allocation2 + $0x158] sm:$0xff]
    %v431 = vld [vmem:[#allocation2 + $0x160] sm:$0xff]
    %v432 = vld [vmem:[#allocation2 + $0x168] sm:$0xff]
    %v433 = vld [vmem:[#allocation2 + $0x170] sm:$0xff]
    %v434 = vld [vmem:[#allocation2 + $0x178] sm:$0xff]
    %v435 = vld [vmem:[#allocation2 + $0x180] sm:$0xff]
    %v436 = vld [vmem:[#allocation2 + $0x188] sm:$0xff]
    %v437 = vld [vmem:[#allocation2 + $0x190] sm:$0xff]
    %v438 = vld [vmem:[#allocation2 + $0x198] sm:$0xff]
    %v439 = vld [vmem:[#allocation2 + $0x1a0] sm:$0xff]
    %v440 = vld [vmem:[#allocation2 + $0x1a8] sm:$0xff]
    %v441 = vld [vmem:[#allocation2 + $0x1b0] sm:$0xff]
    %v442 = vld [vmem:[#allocation2 + $0x1b8] sm:$0xff]
    %v443 = vld [vmem:[#allocation2 + $0x1c0] sm:$0xff]
    %v444 = vld [vmem:[#allocation2 + $0x1c8] sm:$0xff]
    %v445 = vld [vmem:[#allocation2 + $0x1d0] sm:$0xff]
    %v446 = vld [vmem:[#allocation2 + $0x1d8] sm:$0xff]
    %v447 = vld [vmem:[#allocation2 + $0x1e0] sm:$0xff]
    %v448 = vld [vmem:[#allocation2 + $0x1e8] sm:$0xff]
    %v449 = vld [vmem:[#allocation2 + $0x1f0] sm:$0xff]
    %v450 = vld [vmem:[#allocation2 + $0x1f8] sm:$0xff]
    %v451 = vld [vmem:[#allocation2 + $0x200] sm:$0xff]
    %v452 = vld [vmem:[#allocation2 + $0x208] sm:$0xff]
    %v453 = vld [vmem:[#allocation2 + $0x210] sm:$0xff]
    %v454 = vld [vmem:[#allocation2 + $0x218] sm:$0xff]
    %v455 = vld [vmem:[#allocation2 + $0x220] sm:$0xff]
    %v456 = vld [vmem:[#allocation2 + $0x228] sm:$0xff]
    %v457 = vld [vmem:[#allocation2 + $0x230] sm:$0xff]
    %v458 = vld [vmem:[#allocation2 + $0x238] sm:$0xff]
    %v459 = vld [vmem:[#allocation2 + $0x240] sm:$0xff]
    %v460 = vld [vmem:[#allocation2 + $0x248] sm:$0xff]
    %v461 = vld [vmem:[#allocation2 + $0x250] sm:$0xff]
    %v462 = vld [vmem:[#allocation2 + $0x258] sm:$0xff]
    %v463 = vld [vmem:[#allocation2 + $0x260] sm:$0xff]
    %v464 = vld [vmem:[#allocation2 + $0x268] sm:$0xff]
    %v465 = vld [vmem:[#allocation2 + $0x270] sm:$0xff]
    %v466 = vld [vmem:[#allocation2 + $0x278] sm:$0xff]
    %v467 = vld [vmem:[#allocation2 + $0x280] sm:$0xff]
    %v468 = vld [vmem:[#allocation2 + $0x288] sm:$0xff]
    %v469 = vld [vmem:[#allocation2 + $0x290] sm:$0xff]
    %v470 = vld [vmem:[#allocation2 + $0x298] sm:$0xff]
    %v471 = vld [vmem:[#allocation2 + $0x2a0] sm:$0xff]
    %v472 = vld [vmem:[#allocation2 + $0x2a8] sm:$0xff]
    %v473 = vld [vmem:[#allocation2 + $0x2b0] sm:$0xff]
    %v474 = vld [vmem:[#allocation2 + $0x2b8] sm:$0xff]
    %v475 = vld [vmem:[#allocation2 + $0x2c0] sm:$0xff]
    %v476 = vld [vmem:[#allocation2 + $0x2c8] sm:$0xff]
    %v477 = vld [vmem:[#allocation2 + $0x2d0] sm:$0xff]
    %v478 = vld [vmem:[#allocation2 + $0x2d8] sm:$0xff]
    %v479 = vld [vmem:[#allocation2 + $0x2e0] sm:$0xff]
    %v480 = vld [vmem:[#allocation2 + $0x2e8] sm:$0xff]
    %v481 = vld [vmem:[#allocation2 + $0x2f0] sm:$0xff]
    %v482 = vld [vmem:[#allocation2 + $0x2f8] sm:$0xff]
    %v483 = vld [vmem:[#allocation2 + $0x300] sm:$0xff]
    %v484 = vld [vmem:[#allocation2 + $0x308] sm:$0xff]
    %v485 = vld [vmem:[#allocation2 + $0x310] sm:$0xff]
    %v486 = vld [vmem:[#allocation2 + $0x318] sm:$0xff]
    %v487 = vld [vmem:[#allocation2 + $0x320] sm:$0xff]
    %v488 = vld [vmem:[#allocation2 + $0x328] sm:$0xff]
    %v489 = vld [vmem:[#allocation2 + $0x330] sm:$0xff]
    %v490 = vld [vmem:[#allocation2 + $0x338] sm:$0xff]
    %v491 = vld [vmem:[#allocation2 + $0x340] sm:$0xff]
    %v492 = vld [vmem:[#allocation2 + $0x348] sm:$0xff]
    %v493 = vld [vmem:[#allocation2 + $0x350] sm:$0xff]
    %v494 = vld [vmem:[#allocation2 + $0x358] sm:$0xff]
    %v495 = vld [vmem:[#allocation2 + $0x360] sm:$0xff]
    %v496 = vld [vmem:[#allocation2 + $0x368] sm:$0xff]
    %v497 = vld [vmem:[#allocation2 + $0x370] sm:$0xff]
    %v498 = vld [vmem:[#allocation2 + $0x378] sm:$0xff]
    %v499 = vld [vmem:[#allocation2 + $0x380] sm:$0xff]
    %v500 = vld [vmem:[#allocation2 + $0x388] sm:$0xff]
    %v501 = vld [vmem:[#allocation2 + $0x390] sm:$0xff]
    %v502 = vld [vmem:[#allocation2 + $0x398] sm:$0xff]
    %v503 = vld [vmem:[#allocation2 + $0x3a0] sm:$0xff]
    %v504 = vld [vmem:[#allocation2 + $0x3a8] sm:$0xff]
    %v505 = vld [vmem:[#allocation2 + $0x3b0] sm:$0xff]
    %v506 = vld [vmem:[#allocation2 + $0x3b8] sm:$0xff]
    %v507 = vld [vmem:[#allocation2 + $0x3c0] sm:$0xff]
    %v508 = vld [vmem:[#allocation2 + $0x3c8] sm:$0xff]
    %v509 = vld [vmem:[#allocation2 + $0x3d0] sm:$0xff]
    %v510 = vld [vmem:[#allocation2 + $0x3d8] sm:$0xff]
    %v511 = vld [vmem:[#allocation2 + $0x3e0] sm:$0xff]
    %v512 = vld [vmem:[#allocation2 + $0x3e8] sm:$0xff]
    %v513 = vld [vmem:[#allocation2 + $0x3f0] sm:$0xff]
    %v514 = vld [vmem:[#allocation2 + $0x3f8] sm:$0xff]
    %v515 = vld [vmem:[%s6] sm:$0xf]
    %v516 = vunpack.c.l.bf16 %v515
    %v518 = vlaneseq
    %v519 = vshrl.u32 %v518, 7
    %v520 = vsub.s32 0, %v519
    %v521 = vrot.slane %v516, %v520
    %v522 = vlaneseq
    %v523 = vshrl.u32 %v522, 7
    %v524 = vsub.s32 2, %v523
    %v525 = vrot.slane %v516, %v524
    %v526 = vlaneseq
    %v527 = vshrl.u32 %v526, 7
    %v528 = vsub.s32 4, %v527
    %v529 = vrot.slane %v516, %v528
    %v530 = vlaneseq
    %v531 = vshrl.u32 %v530, 7
    %v532 = vsub.s32 6, %v531
    %v533 = vrot.slane %v516, %v532
    %v538 = vlaneseq
    %v539 = vshrl.u32 %v538, 7
    %v540 = vsub.s32 0, %v539
    %v541 = vrot.slane %v521, %v540
    %v542 = vlaneseq
    %v543 = vshrl.u32 %v542, 7
    %v544 = vsub.s32 0, %v543
    %v545 = vrot.slane %v525, %v544
    %v546 = vlaneseq
    %v547 = vshrl.u32 %v546, 7
    %v548 = vsub.s32 0, %v547
    %v549 = vrot.slane %v529, %v548
    %v550 = vlaneseq
    %v551 = vshrl.u32 %v550, 7
    %v552 = vsub.s32 0, %v551
    %v553 = vrot.slane %v533, %v552
    %v682 = vunpack.c.l.b16 %v387
    %v683 = vunpack.c.h.b16 %v387
    %v684 = vunpack.c.l.b16 %v388
    %v685 = vunpack.c.h.b16 %v388
    %v686 = vunpack.c.l.b16 %v389
    %v687 = vunpack.c.h.b16 %v389
    %v688 = vunpack.c.l.b16 %v390
    %v689 = vunpack.c.h.b16 %v390
    %v690 = vunpack.c.l.b16 %v391
    %v691 = vunpack.c.h.b16 %v391
    %v692 = vunpack.c.l.b16 %v392
    %v693 = vunpack.c.h.b16 %v392
    %v694 = vunpack.c.l.b16 %v393
    %v695 = vunpack.c.h.b16 %v393
    %v696 = vunpack.c.l.b16 %v394
    %v697 = vunpack.c.h.b16 %v394
    %v698 = vunpack.c.l.b16 %v395
    %v699 = vunpack.c.h.b16 %v395
    %v700 = vunpack.c.l.b16 %v396
    %v701 = vunpack.c.h.b16 %v396
    %v702 = vunpack.c.l.b16 %v397
    %v703 = vunpack.c.h.b16 %v397
    %v704 = vunpack.c.l.b16 %v398
    %v705 = vunpack.c.h.b16 %v398
    %v706 = vunpack.c.l.b16 %v399
    %v707 = vunpack.c.h.b16 %v399
    %v708 = vunpack.c.l.b16 %v400
    %v709 = vunpack.c.h.b16 %v400
    %v710 = vunpack.c.l.b16 %v401
    %v711 = vunpack.c.h.b16 %v401
    %v712 = vunpack.c.l.b16 %v402
    %v713 = vunpack.c.h.b16 %v402
    %v714 = vunpack.c.l.b16 %v403
    %v715 = vunpack.c.h.b16 %v403
    %v716 = vunpack.c.l.b16 %v404
    %v717 = vunpack.c.h.b16 %v404
    %v718 = vunpack.c.l.b16 %v405
    %v719 = vunpack.c.h.b16 %v405
    %v720 = vunpack.c.l.b16 %v406
    %v721 = vunpack.c.h.b16 %v406
    %v722 = vunpack.c.l.b16 %v407
    %v723 = vunpack.c.h.b16 %v407
    %v724 = vunpack.c.l.b16 %v408
    %v725 = vunpack.c.h.b16 %v408
    %v726 = vunpack.c.l.b16 %v409
    %v727 = vunpack.c.h.b16 %v409
    %v728 = vunpack.c.l.b16 %v410
    %v729 = vunpack.c.h.b16 %v410
    %v730 = vunpack.c.l.b16 %v411
    %v731 = vunpack.c.h.b16 %v411
    %v732 = vunpack.c.l.b16 %v412
    %v733 = vunpack.c.h.b16 %v412
    %v734 = vunpack.c.l.b16 %v413
    %v735 = vunpack.c.h.b16 %v413
    %v736 = vunpack.c.l.b16 %v414
    %v737 = vunpack.c.h.b16 %v414
    %v738 = vunpack.c.l.b16 %v415
    %v739 = vunpack.c.h.b16 %v415
    %v740 = vunpack.c.l.b16 %v416
    %v741 = vunpack.c.h.b16 %v416
    %v742 = vunpack.c.l.b16 %v417
    %v743 = vunpack.c.h.b16 %v417
    %v744 = vunpack.c.l.b16 %v418
    %v745 = vunpack.c.h.b16 %v418
    %v746 = vunpack.c.l.b16 %v419
    %v747 = vunpack.c.h.b16 %v419
    %v748 = vunpack.c.l.b16 %v420
    %v749 = vunpack.c.h.b16 %v420
    %v750 = vunpack.c.l.b16 %v421
    %v751 = vunpack.c.h.b16 %v421
    %v752 = vunpack.c.l.b16 %v422
    %v753 = vunpack.c.h.b16 %v422
    %v754 = vunpack.c.l.b16 %v423
    %v755 = vunpack.c.h.b16 %v423
    %v756 = vunpack.c.l.b16 %v424
    %v757 = vunpack.c.h.b16 %v424
    %v758 = vunpack.c.l.b16 %v425
    %v759 = vunpack.c.h.b16 %v425
    %v760 = vunpack.c.l.b16 %v426
    %v761 = vunpack.c.h.b16 %v426
    %v762 = vunpack.c.l.b16 %v427
    %v763 = vunpack.c.h.b16 %v427
    %v764 = vunpack.c.l.b16 %v428
    %v765 = vunpack.c.h.b16 %v428
    %v766 = vunpack.c.l.b16 %v429
    %v767 = vunpack.c.h.b16 %v429
    %v768 = vunpack.c.l.b16 %v430
    %v769 = vunpack.c.h.b16 %v430
    %v770 = vunpack.c.l.b16 %v431
    %v771 = vunpack.c.h.b16 %v431
    %v772 = vunpack.c.l.b16 %v432
    %v773 = vunpack.c.h.b16 %v432
    %v774 = vunpack.c.l.b16 %v433
    %v775 = vunpack.c.h.b16 %v433
    %v776 = vunpack.c.l.b16 %v434
    %v777 = vunpack.c.h.b16 %v434
    %v778 = vunpack.c.l.b16 %v435
    %v779 = vunpack.c.h.b16 %v435
    %v780 = vunpack.c.l.b16 %v436
    %v781 = vunpack.c.h.b16 %v436
    %v782 = vunpack.c.l.b16 %v437
    %v783 = vunpack.c.h.b16 %v437
    %v784 = vunpack.c.l.b16 %v438
    %v785 = vunpack.c.h.b16 %v438
    %v786 = vunpack.c.l.b16 %v439
    %v787 = vunpack.c.h.b16 %v439
    %v788 = vunpack.c.l.b16 %v440
    %v789 = vunpack.c.h.b16 %v440
    %v790 = vunpack.c.l.b16 %v441
    %v791 = vunpack.c.h.b16 %v441
    %v792 = vunpack.c.l.b16 %v442
    %v793 = vunpack.c.h.b16 %v442
    %v794 = vunpack.c.l.b16 %v443
    %v795 = vunpack.c.h.b16 %v443
    %v796 = vunpack.c.l.b16 %v444
    %v797 = vunpack.c.h.b16 %v444
    %v798 = vunpack.c.l.b16 %v445
    %v799 = vunpack.c.h.b16 %v445
    %v800 = vunpack.c.l.b16 %v446
    %v801 = vunpack.c.h.b16 %v446
    %v802 = vunpack.c.l.b16 %v447
    %v803 = vunpack.c.h.b16 %v447
    %v804 = vunpack.c.l.b16 %v448
    %v805 = vunpack.c.h.b16 %v448
    %v806 = vunpack.c.l.b16 %v449
    %v807 = vunpack.c.h.b16 %v449
    %v808 = vunpack.c.l.b16 %v450
    %v809 = vunpack.c.h.b16 %v450
    %v810 = vunpack.c.l.b16 %v451
    %v811 = vunpack.c.h.b16 %v451
    %v812 = vunpack.c.l.b16 %v452
    %v813 = vunpack.c.h.b16 %v452
    %v814 = vunpack.c.l.b16 %v453
    %v815 = vunpack.c.h.b16 %v453
    %v816 = vunpack.c.l.b16 %v454
    %v817 = vunpack.c.h.b16 %v454
    %v818 = vunpack.c.l.b16 %v455
    %v819 = vunpack.c.h.b16 %v455
    %v820 = vunpack.c.l.b16 %v456
    %v821 = vunpack.c.h.b16 %v456
    %v822 = vunpack.c.l.b16 %v457
    %v823 = vunpack.c.h.b16 %v457
    %v824 = vunpack.c.l.b16 %v458
    %v825 = vunpack.c.h.b16 %v458
    %v826 = vunpack.c.l.b16 %v459
    %v827 = vunpack.c.h.b16 %v459
    %v828 = vunpack.c.l.b16 %v460
    %v829 = vunpack.c.h.b16 %v460
    %v830 = vunpack.c.l.b16 %v461
    %v831 = vunpack.c.h.b16 %v461
    %v832 = vunpack.c.l.b16 %v462
    %v833 = vunpack.c.h.b16 %v462
    %v834 = vunpack.c.l.b16 %v463
    %v835 = vunpack.c.h.b16 %v463
    %v836 = vunpack.c.l.b16 %v464
    %v837 = vunpack.c.h.b16 %v464
    %v838 = vunpack.c.l.b16 %v465
    %v839 = vunpack.c.h.b16 %v465
    %v840 = vunpack.c.l.b16 %v466
    %v841 = vunpack.c.h.b16 %v466
    %v842 = vunpack.c.l.b16 %v467
    %v843 = vunpack.c.h.b16 %v467
    %v844 = vunpack.c.l.b16 %v468
    %v845 = vunpack.c.h.b16 %v468
    %v846 = vunpack.c.l.b16 %v469
    %v847 = vunpack.c.h.b16 %v469
    %v848 = vunpack.c.l.b16 %v470
    %v849 = vunpack.c.h.b16 %v470
    %v850 = vunpack.c.l.b16 %v471
    %v851 = vunpack.c.h.b16 %v471
    %v852 = vunpack.c.l.b16 %v472
    %v853 = vunpack.c.h.b16 %v472
    %v854 = vunpack.c.l.b16 %v473
    %v855 = vunpack.c.h.b16 %v473
    %v856 = vunpack.c.l.b16 %v474
    %v857 = vunpack.c.h.b16 %v474
    %v858 = vunpack.c.l.b16 %v475
    %v859 = vunpack.c.h.b16 %v475
    %v860 = vunpack.c.l.b16 %v476
    %v861 = vunpack.c.h.b16 %v476
    %v862 = vunpack.c.l.b16 %v477
    %v863 = vunpack.c.h.b16 %v477
    %v864 = vunpack.c.l.b16 %v478
    %v865 = vunpack.c.h.b16 %v478
    %v866 = vunpack.c.l.b16 %v479
    %v867 = vunpack.c.h.b16 %v479
    %v868 = vunpack.c.l.b16 %v480
    %v869 = vunpack.c.h.b16 %v480
    %v870 = vunpack.c.l.b16 %v481
    %v871 = vunpack.c.h.b16 %v481
    %v872 = vunpack.c.l.b16 %v482
    %v873 = vunpack.c.h.b16 %v482
    %v874 = vunpack.c.l.b16 %v483
    %v875 = vunpack.c.h.b16 %v483
    %v876 = vunpack.c.l.b16 %v484
    %v877 = vunpack.c.h.b16 %v484
    %v878 = vunpack.c.l.b16 %v485
    %v879 = vunpack.c.h.b16 %v485
    %v880 = vunpack.c.l.b16 %v486
    %v881 = vunpack.c.h.b16 %v486
    %v882 = vunpack.c.l.b16 %v487
    %v883 = vunpack.c.h.b16 %v487
    %v884 = vunpack.c.l.b16 %v488
    %v885 = vunpack.c.h.b16 %v488
    %v886 = vunpack.c.l.b16 %v489
    %v887 = vunpack.c.h.b16 %v489
    %v888 = vunpack.c.l.b16 %v490
    %v889 = vunpack.c.h.b16 %v490
    %v890 = vunpack.c.l.b16 %v491
    %v891 = vunpack.c.h.b16 %v491
    %v892 = vunpack.c.l.b16 %v492
    %v893 = vunpack.c.h.b16 %v492
    %v894 = vunpack.c.l.b16 %v493
    %v895 = vunpack.c.h.b16 %v493
    %v896 = vunpack.c.l.b16 %v494
    %v897 = vunpack.c.h.b16 %v494
    %v898 = vunpack.c.l.b16 %v495
    %v899 = vunpack.c.h.b16 %v495
    %v900 = vunpack.c.l.b16 %v496
    %v901 = vunpack.c.h.b16 %v496
    %v902 = vunpack.c.l.b16 %v497
    %v903 = vunpack.c.h.b16 %v497
    %v904 = vunpack.c.l.b16 %v498
    %v905 = vunpack.c.h.b16 %v498
    %v906 = vunpack.c.l.b16 %v499
    %v907 = vunpack.c.h.b16 %v499
    %v908 = vunpack.c.l.b16 %v500
    %v909 = vunpack.c.h.b16 %v500
    %v910 = vunpack.c.l.b16 %v501
    %v911 = vunpack.c.h.b16 %v501
    %v912 = vunpack.c.l.b16 %v502
    %v913 = vunpack.c.h.b16 %v502
    %v914 = vunpack.c.l.b16 %v503
    %v915 = vunpack.c.h.b16 %v503
    %v916 = vunpack.c.l.b16 %v504
    %v917 = vunpack.c.h.b16 %v504
    %v918 = vunpack.c.l.b16 %v505
    %v919 = vunpack.c.h.b16 %v505
    %v920 = vunpack.c.l.b16 %v506
    %v921 = vunpack.c.h.b16 %v506
    %v922 = vunpack.c.l.b16 %v507
    %v923 = vunpack.c.h.b16 %v507
    %v924 = vunpack.c.l.b16 %v508
    %v925 = vunpack.c.h.b16 %v508
    %v926 = vunpack.c.l.b16 %v509
    %v927 = vunpack.c.h.b16 %v509
    %v928 = vunpack.c.l.b16 %v510
    %v929 = vunpack.c.h.b16 %v510
    %v930 = vunpack.c.l.b16 %v511
    %v931 = vunpack.c.h.b16 %v511
    %v932 = vunpack.c.l.b16 %v512
    %v933 = vunpack.c.h.b16 %v512
    %v934 = vunpack.c.l.b16 %v513
    %v935 = vunpack.c.h.b16 %v513
    %v936 = vunpack.c.l.b16 %v514
    %v937 = vunpack.c.h.b16 %v514
    %v938 = vpack.c.b16 %v686, %v682
    %v939 = vpack.c.b16 %v687, %v683
    %v940 = vpack.c.b16 %v688, %v684
    %v941 = vpack.c.b16 %v689, %v685
    %v942 = vpack.c.b16 %v694, %v690
    %v943 = vpack.c.b16 %v695, %v691
    %v944 = vpack.c.b16 %v696, %v692
    %v945 = vpack.c.b16 %v697, %v693
    %v946 = vpack.c.b16 %v702, %v698
    %v947 = vpack.c.b16 %v703, %v699
    %v948 = vpack.c.b16 %v704, %v700
    %v949 = vpack.c.b16 %v705, %v701
    %v950 = vpack.c.b16 %v710, %v706
    %v951 = vpack.c.b16 %v711, %v707
    %v952 = vpack.c.b16 %v712, %v708
    %v953 = vpack.c.b16 %v713, %v709
    %v954 = vpack.c.b16 %v718, %v714
    %v955 = vpack.c.b16 %v719, %v715
    %v956 = vpack.c.b16 %v720, %v716
    %v957 = vpack.c.b16 %v721, %v717
    %v958 = vpack.c.b16 %v726, %v722
    %v959 = vpack.c.b16 %v727, %v723
    %v960 = vpack.c.b16 %v728, %v724
    %v961 = vpack.c.b16 %v729, %v725
    %v962 = vpack.c.b16 %v734, %v730
    %v963 = vpack.c.b16 %v735, %v731
    %v964 = vpack.c.b16 %v736, %v732
    %v965 = vpack.c.b16 %v737, %v733
    %v966 = vpack.c.b16 %v742, %v738
    %v967 = vpack.c.b16 %v743, %v739
    %v968 = vpack.c.b16 %v744, %v740
    %v969 = vpack.c.b16 %v745, %v741
    %v970 = vpack.c.b16 %v750, %v746
    %v971 = vpack.c.b16 %v751, %v747
    %v972 = vpack.c.b16 %v752, %v748
    %v973 = vpack.c.b16 %v753, %v749
    %v974 = vpack.c.b16 %v758, %v754
    %v975 = vpack.c.b16 %v759, %v755
    %v976 = vpack.c.b16 %v760, %v756
    %v977 = vpack.c.b16 %v761, %v757
    %v978 = vpack.c.b16 %v766, %v762
    %v979 = vpack.c.b16 %v767, %v763
    %v980 = vpack.c.b16 %v768, %v764
    %v981 = vpack.c.b16 %v769, %v765
    %v982 = vpack.c.b16 %v774, %v770
    %v983 = vpack.c.b16 %v775, %v771
    %v984 = vpack.c.b16 %v776, %v772
    %v985 = vpack.c.b16 %v777, %v773
    %v986 = vpack.c.b16 %v782, %v778
    %v987 = vpack.c.b16 %v783, %v779
    %v988 = vpack.c.b16 %v784, %v780
    %v989 = vpack.c.b16 %v785, %v781
    %v990 = vpack.c.b16 %v790, %v786
    %v991 = vpack.c.b16 %v791, %v787
    %v992 = vpack.c.b16 %v792, %v788
    %v993 = vpack.c.b16 %v793, %v789
    %v994 = vpack.c.b16 %v798, %v794
    %v995 = vpack.c.b16 %v799, %v795
    %v996 = vpack.c.b16 %v800, %v796
    %v997 = vpack.c.b16 %v801, %v797
    %v998 = vpack.c.b16 %v806, %v802
    %v999 = vpack.c.b16 %v807, %v803
    %v1000 = vpack.c.b16 %v808, %v804
    %v1001 = vpack.c.b16 %v809, %v805
    %v1002 = vpack.c.b16 %v814, %v810
    %v1003 = vpack.c.b16 %v815, %v811
    %v1004 = vpack.c.b16 %v816, %v812
    %v1005 = vpack.c.b16 %v817, %v813
    %v1006 = vpack.c.b16 %v822, %v818
    %v1007 = vpack.c.b16 %v823, %v819
    %v1008 = vpack.c.b16 %v824, %v820
    %v1009 = vpack.c.b16 %v825, %v821
    %v1010 = vpack.c.b16 %v830, %v826
    %v1011 = vpack.c.b16 %v831, %v827
    %v1012 = vpack.c.b16 %v832, %v828
    %v1013 = vpack.c.b16 %v833, %v829
    %v1014 = vpack.c.b16 %v838, %v834
    %v1015 = vpack.c.b16 %v839, %v835
    %v1016 = vpack.c.b16 %v840, %v836
    %v1017 = vpack.c.b16 %v841, %v837
    %v1018 = vpack.c.b16 %v846, %v842
    %v1019 = vpack.c.b16 %v847, %v843
    %v1020 = vpack.c.b16 %v848, %v844
    %v1021 = vpack.c.b16 %v849, %v845
    %v1022 = vpack.c.b16 %v854, %v850
    %v1023 = vpack.c.b16 %v855, %v851
    %v1024 = vpack.c.b16 %v856, %v852
    %v1025 = vpack.c.b16 %v857, %v853
    %v1026 = vpack.c.b16 %v862, %v858
    %v1027 = vpack.c.b16 %v863, %v859
    %v1028 = vpack.c.b16 %v864, %v860
    %v1029 = vpack.c.b16 %v865, %v861
    %v1030 = vpack.c.b16 %v870, %v866
    %v1031 = vpack.c.b16 %v871, %v867
    %v1032 = vpack.c.b16 %v872, %v868
    %v1033 = vpack.c.b16 %v873, %v869
    %v1034 = vpack.c.b16 %v878, %v874
    %v1035 = vpack.c.b16 %v879, %v875
    %v1036 = vpack.c.b16 %v880, %v876
    %v1037 = vpack.c.b16 %v881, %v877
    %v1038 = vpack.c.b16 %v886, %v882
    %v1039 = vpack.c.b16 %v887, %v883
    %v1040 = vpack.c.b16 %v888, %v884
    %v1041 = vpack.c.b16 %v889, %v885
    %v1042 = vpack.c.b16 %v894, %v890
    %v1043 = vpack.c.b16 %v895, %v891
    %v1044 = vpack.c.b16 %v896, %v892
    %v1045 = vpack.c.b16 %v897, %v893
    %v1046 = vpack.c.b16 %v902, %v898
    %v1047 = vpack.c.b16 %v903, %v899
    %v1048 = vpack.c.b16 %v904, %v900
    %v1049 = vpack.c.b16 %v905, %v901
    %v1050 = vpack.c.b16 %v910, %v906
    %v1051 = vpack.c.b16 %v911, %v907
    %v1052 = vpack.c.b16 %v912, %v908
    %v1053 = vpack.c.b16 %v913, %v909
    %v1054 = vpack.c.b16 %v918, %v914
    %v1055 = vpack.c.b16 %v919, %v915
    %v1056 = vpack.c.b16 %v920, %v916
    %v1057 = vpack.c.b16 %v921, %v917
    %v1058 = vpack.c.b16 %v926, %v922
    %v1059 = vpack.c.b16 %v927, %v923
    %v1060 = vpack.c.b16 %v928, %v924
    %v1061 = vpack.c.b16 %v929, %v925
    %v1062 = vpack.c.b16 %v934, %v930
    %v1063 = vpack.c.b16 %v935, %v931
    %v1064 = vpack.c.b16 %v936, %v932
    %v1065 = vpack.c.b16 %v937, %v933
    %1194 = vmatprep.subr.bf16.mxu0 %v967
    %1195 = vmatpush1.bf16.msra.mxu0 %v966
    %1196 = vmatprep.subr.bf16.mxu0 %v963
    %1197 = vmatpush1.bf16.msra.mxu0 %v962
    %1198 = vmatprep.subr.bf16.mxu0 %v959
    %1199 = vmatpush1.bf16.msra.mxu0 %v958
    %1200 = vmatprep.subr.bf16.mxu0 %v955
    %1201 = vmatpush1.bf16.msra.mxu0 %v954
    %1202 = vmatprep.subr.bf16.mxu0 %v951
    %1203 = vmatpush1.bf16.msra.mxu0 %v950
    %1204 = vmatprep.subr.bf16.mxu0 %v947
    %1205 = vmatpush1.bf16.msra.mxu0 %v946
    %1206 = vmatprep.subr.bf16.mxu0 %v943
    %1207 = vmatpush1.bf16.msra.mxu0 %v942
    %1208 = vmatprep.subr.bf16.mxu0 %v939
    %1209 = vmatpush1.bf16.msra.mxu0 %v938
    %1210 = vmatprep.subr.bf16.mxu0 %v999
    %1211 = vmatpush2.bf16.msra.mxu0 %v998
    %1212 = vmatprep.subr.bf16.mxu0 %v995
    %1213 = vmatpush2.bf16.msra.mxu0 %v994
    %1214 = vmatprep.subr.bf16.mxu0 %v991
    %1215 = vmatpush2.bf16.msra.mxu0 %v990
    %1216 = vmatprep.subr.bf16.mxu0 %v987
    %1217 = vmatpush2.bf16.msra.mxu0 %v986
    %1218 = vmatprep.subr.bf16.mxu0 %v983
    %1219 = vmatpush2.bf16.msra.mxu0 %v982
    %1220 = vmatprep.subr.bf16.mxu0 %v979
    %1221 = vmatpush2.bf16.msra.mxu0 %v978
    %1222 = vmatprep.subr.bf16.mxu0 %v975
    %1223 = vmatpush2.bf16.msra.mxu0 %v974
    %1224 = vmatprep.subr.bf16.mxu0 %v971
    %1225 = vmatpush2.bf16.msra.mxu0 %v970
    %1226 = vmatprep.mubr.bf16.mxu0 %v384
    %1227 = vmatmul.mubr.bf16.gmra.mxu0 %v383
    %v1228 = vpop.f32.mrf.mxu0
    %v1229 = vadd.f32 %v541, %v1228
    %v1230 = vpop.f32.mrf.mxu0
    %v1231 = vadd.f32 %v545, %v1230
    %v1232 = vpop.f32.mrf.mxu0
    %v1233 = vpop.f32.mrf.mxu0
    %1234 = vdwg.mxu0
    %1235 = vmatprep.subr.bf16.mxu0 %v1031
    %1236 = vmatpush1.bf16.msra.mxu0 %v1030
    %1237 = vmatprep.subr.bf16.mxu0 %v1027
    %1238 = vmatpush1.bf16.msra.mxu0 %v1026
    %1239 = vmatprep.subr.bf16.mxu0 %v1023
    %1240 = vmatpush1.bf16.msra.mxu0 %v1022
    %1241 = vmatprep.subr.bf16.mxu0 %v1019
    %1242 = vmatpush1.bf16.msra.mxu0 %v1018
    %1243 = vmatprep.subr.bf16.mxu0 %v1015
    %1244 = vmatpush1.bf16.msra.mxu0 %v1014
    %1245 = vmatprep.subr.bf16.mxu0 %v1011
    %1246 = vmatpush1.bf16.msra.mxu0 %v1010
    %1247 = vmatprep.subr.bf16.mxu0 %v1007
    %1248 = vmatpush1.bf16.msra.mxu0 %v1006
    %1249 = vmatprep.subr.bf16.mxu0 %v1003
    %1250 = vmatpush1.bf16.msra.mxu0 %v1002
    %1251 = vmatprep.subr.bf16.mxu0 %v1063
    %1252 = vmatpush2.bf16.msra.mxu0 %v1062
    %1253 = vmatprep.subr.bf16.mxu0 %v1059
    %1254 = vmatpush2.bf16.msra.mxu0 %v1058
    %1255 = vmatprep.subr.bf16.mxu0 %v1055
    %1256 = vmatpush2.bf16.msra.mxu0 %v1054
    %1257 = vmatprep.subr.bf16.mxu0 %v1051
    %1258 = vmatpush2.bf16.msra.mxu0 %v1050
    %1259 = vmatprep.subr.bf16.mxu0 %v1047
    %1260 = vmatpush2.bf16.msra.mxu0 %v1046
    %1261 = vmatprep.subr.bf16.mxu0 %v1043
    %1262 = vmatpush2.bf16.msra.mxu0 %v1042
    %1263 = vmatprep.subr.bf16.mxu0 %v1039
    %1264 = vmatpush2.bf16.msra.mxu0 %v1038
    %1265 = vmatprep.subr.bf16.mxu0 %v1035
    %1266 = vmatpush2.bf16.msra.mxu0 %v1034
    %1267 = vmatprep.mubr.bf16.mxu0 %v386
    %1268 = vmatmul.mubr.bf16.gmra.mxu0 %v385
    %v1269 = vpop.f32.mrf.mxu0
    %v1270 = vadd.f32 %v1229, %v1269
    %v1271 = vpop.f32.mrf.mxu0
    %v1272 = vadd.f32 %v1231, %v1271
    %v1273 = vpop.f32.mrf.mxu0
    %v1274 = vpop.f32.mrf.mxu0
    %1275 = vdwg.mxu0
    %1276 = vmatprep.subr.bf16.mxu0 %v969
    %1277 = vmatpush1.bf16.msra.mxu0 %v968
    %1278 = vmatprep.subr.bf16.mxu0 %v965
    %1279 = vmatpush1.bf16.msra.mxu0 %v964
    %1280 = vmatprep.subr.bf16.mxu0 %v961
    %1281 = vmatpush1.bf16.msra.mxu0 %v960
    %1282 = vmatprep.subr.bf16.mxu0 %v957
    %1283 = vmatpush1.bf16.msra.mxu0 %v956
    %1284 = vmatprep.subr.bf16.mxu0 %v953
    %1285 = vmatpush1.bf16.msra.mxu0 %v952
    %1286 = vmatprep.subr.bf16.mxu0 %v949
    %1287 = vmatpush1.bf16.msra.mxu0 %v948
    %1288 = vmatprep.subr.bf16.mxu0 %v945
    %1289 = vmatpush1.bf16.msra.mxu0 %v944
    %1290 = vmatprep.subr.bf16.mxu0 %v941
    %1291 = vmatpush1.bf16.msra.mxu0 %v940
    %1292 = vmatprep.subr.bf16.mxu0 %v1001
    %1293 = vmatpush2.bf16.msra.mxu0 %v1000
    %1294 = vmatprep.subr.bf16.mxu0 %v997
    %1295 = vmatpush2.bf16.msra.mxu0 %v996
    %1296 = vmatprep.subr.bf16.mxu0 %v993
    %1297 = vmatpush2.bf16.msra.mxu0 %v992
    %1298 = vmatprep.subr.bf16.mxu0 %v989
    %1299 = vmatpush2.bf16.msra.mxu0 %v988
    %1300 = vmatprep.subr.bf16.mxu0 %v985
    %1301 = vmatpush2.bf16.msra.mxu0 %v984
    %1302 = vmatprep.subr.bf16.mxu0 %v981
    %1303 = vmatpush2.bf16.msra.mxu0 %v980
    %1304 = vmatprep.subr.bf16.mxu0 %v977
    %1305 = vmatpush2.bf16.msra.mxu0 %v976
    %1306 = vmatprep.subr.bf16.mxu0 %v973
    %1307 = vmatpush2.bf16.msra.mxu0 %v972
    %1308 = vmatprep.mubr.bf16.mxu0 %v384
    %1309 = vmatmul.mubr.bf16.gmra.mxu0 %v383
    %v1310 = vpop.f32.mrf.mxu0
    %v1311 = vadd.f32 %v549, %v1310
    %v1312 = vpop.f32.mrf.mxu0
    %v1313 = vadd.f32 %v553, %v1312
    %v1314 = vpop.f32.mrf.mxu0
    %v1315 = vpop.f32.mrf.mxu0
    %1316 = vdwg.mxu0
    %1317 = vmatprep.subr.bf16.mxu0 %v1033
    %1318 = vmatpush1.bf16.msra.mxu0 %v1032
    %1319 = vmatprep.subr.bf16.mxu0 %v1029
    %1320 = vmatpush1.bf16.msra.mxu0 %v1028
    %1321 = vmatprep.subr.bf16.mxu0 %v1025
    %1322 = vmatpush1.bf16.msra.mxu0 %v1024
    %1323 = vmatprep.subr.bf16.mxu0 %v1021
    %1324 = vmatpush1.bf16.msra.mxu0 %v1020
    %1325 = vmatprep.subr.bf16.mxu0 %v1017
    %1326 = vmatpush1.bf16.msra.mxu0 %v1016
    %1327 = vmatprep.subr.bf16.mxu0 %v1013
    %1328 = vmatpush1.bf16.msra.mxu0 %v1012
    %1329 = vmatprep.subr.bf16.mxu0 %v1009
    %1330 = vmatpush1.bf16.msra.mxu0 %v1008
    %1331 = vmatprep.subr.bf16.mxu0 %v1005
    %1332 = vmatpush1.bf16.msra.mxu0 %v1004
    %1333 = vmatprep.subr.bf16.mxu0 %v1065
    %1334 = vmatpush2.bf16.msra.mxu0 %v1064
    %1335 = vmatprep.subr.bf16.mxu0 %v1061
    %1336 = vmatpush2.bf16.msra.mxu0 %v1060
    %1337 = vmatprep.subr.bf16.mxu0 %v1057
    %1338 = vmatpush2.bf16.msra.mxu0 %v1056
    %1339 = vmatprep.subr.bf16.mxu0 %v1053
    %1340 = vmatpush2.bf16.msra.mxu0 %v1052
    %1341 = vmatprep.subr.bf16.mxu0 %v1049
    %1342 = vmatpush2.bf16.msra.mxu0 %v1048
    %1343 = vmatprep.subr.bf16.mxu0 %v1045
    %1344 = vmatpush2.bf16.msra.mxu0 %v1044
    %1345 = vmatprep.subr.bf16.mxu0 %v1041
    %1346 = vmatpush2.bf16.msra.mxu0 %v1040
    %1347 = vmatprep.subr.bf16.mxu0 %v1037
    %1348 = vmatpush2.bf16.msra.mxu0 %v1036
    %1349 = vmatprep.mubr.bf16.mxu0 %v386
    %1350 = vmatmul.mubr.bf16.gmra.mxu0 %v385
    %v1351 = vpop.f32.mrf.mxu0
    %v1352 = vadd.f32 %v1311, %v1351
    %v1353 = vpop.f32.mrf.mxu0
    %v1354 = vadd.f32 %v1313, %v1353
    %v1355 = vpop.f32.mrf.mxu0
    %v1356 = vpop.f32.mrf.mxu0
    %1357 = vdwg.mxu0
    %v1358 = vmax.f32 %v1270, 0.0
    %v1359 = vmax.f32 %v1272, 0.0
    %v1360 = vmax.f32 %v1352, 0.0
    %v1361 = vmax.f32 %v1354, 0.0
    %v1362 = vpack.c.bf16 %v1358, %v1358
    %v1363 = vpack.c.bf16 %v1359, %v1359
    %v1364 = vpack.c.bf16 %v1360, %v1360
    %v1365 = vpack.c.bf16 %v1361, %v1361
    %v1366 = vld [vmem:[%s7] sm:$0xf]
    %v1367 = vld [vmem:[%s7 + $0x4] sm:$0xf]
    %v1368 = vld [vmem:[%s7 + $0x8] sm:$0xf]
    %v1369 = vld [vmem:[%s7 + $0xc] sm:$0xf]
    %v1370 = vld [vmem:[%s7 + $0x10] sm:$0xf]
    %v1371 = vld [vmem:[%s7 + $0x14] sm:$0xf]
    %v1372 = vld [vmem:[%s7 + $0x18] sm:$0xf]
    %v1373 = vld [vmem:[%s7 + $0x1c] sm:$0xf]
    %v1374 = vld [vmem:[%s7 + $0x20] sm:$0xf]
    %v1375 = vld [vmem:[%s7 + $0x24] sm:$0xf]
    %v1376 = vld [vmem:[%s7 + $0x28] sm:$0xf]
    %v1377 = vld [vmem:[%s7 + $0x2c] sm:$0xf]
    %v1378 = vld [vmem:[%s7 + $0x30] sm:$0xf]
    %v1379 = vld [vmem:[%s7 + $0x34] sm:$0xf]
    %v1380 = vld [vmem:[%s7 + $0x38] sm:$0xf]
    %v1381 = vld [vmem:[%s7 + $0x3c] sm:$0xf]
    %v1382 = vld [vmem:[%s7 + $0x40] sm:$0xf]
    %v1383 = vld [vmem:[%s7 + $0x44] sm:$0xf]
    %v1384 = vld [vmem:[%s7 + $0x48] sm:$0xf]
    %v1385 = vld [vmem:[%s7 + $0x4c] sm:$0xf]
    %v1386 = vld [vmem:[%s7 + $0x50] sm:$0xf]
    %v1387 = vld [vmem:[%s7 + $0x54] sm:$0xf]
    %v1388 = vld [vmem:[%s7 + $0x58] sm:$0xf]
    %v1389 = vld [vmem:[%s7 + $0x5c] sm:$0xf]
    %v1390 = vld [vmem:[%s7 + $0x60] sm:$0xf]
    %v1391 = vld [vmem:[%s7 + $0x64] sm:$0xf]
    %v1392 = vld [vmem:[%s7 + $0x68] sm:$0xf]
    %v1393 = vld [vmem:[%s7 + $0x6c] sm:$0xf]
    %v1394 = vld [vmem:[%s7 + $0x70] sm:$0xf]
    %v1395 = vld [vmem:[%s7 + $0x74] sm:$0xf]
    %v1396 = vld [vmem:[%s7 + $0x78] sm:$0xf]
    %v1397 = vld [vmem:[%s7 + $0x7c] sm:$0xf]
    %v1398 = vld [vmem:[%s7 + $0x80] sm:$0xf]
    %v1399 = vld [vmem:[%s7 + $0x84] sm:$0xf]
    %v1400 = vld [vmem:[%s7 + $0x88] sm:$0xf]
    %v1401 = vld [vmem:[%s7 + $0x8c] sm:$0xf]
    %v1402 = vld [vmem:[%s7 + $0x90] sm:$0xf]
    %v1403 = vld [vmem:[%s7 + $0x94] sm:$0xf]
    %v1404 = vld [vmem:[%s7 + $0x98] sm:$0xf]
    %v1405 = vld [vmem:[%s7 + $0x9c] sm:$0xf]
    %v1406 = vld [vmem:[%s7 + $0xa0] sm:$0xf]
    %v1407 = vld [vmem:[%s7 + $0xa4] sm:$0xf]
    %v1408 = vld [vmem:[%s7 + $0xa8] sm:$0xf]
    %v1409 = vld [vmem:[%s7 + $0xac] sm:$0xf]
    %v1410 = vld [vmem:[%s7 + $0xb0] sm:$0xf]
    %v1411 = vld [vmem:[%s7 + $0xb4] sm:$0xf]
    %v1412 = vld [vmem:[%s7 + $0xb8] sm:$0xf]
    %v1413 = vld [vmem:[%s7 + $0xbc] sm:$0xf]
    %v1414 = vld [vmem:[%s7 + $0xc0] sm:$0xf]
    %v1415 = vld [vmem:[%s7 + $0xc4] sm:$0xf]
    %v1416 = vld [vmem:[%s7 + $0xc8] sm:$0xf]
    %v1417 = vld [vmem:[%s7 + $0xcc] sm:$0xf]
    %v1418 = vld [vmem:[%s7 + $0xd0] sm:$0xf]
    %v1419 = vld [vmem:[%s7 + $0xd4] sm:$0xf]
    %v1420 = vld [vmem:[%s7 + $0xd8] sm:$0xf]
    %v1421 = vld [vmem:[%s7 + $0xdc] sm:$0xf]
    %v1422 = vld [vmem:[%s7 + $0xe0] sm:$0xf]
    %v1423 = vld [vmem:[%s7 + $0xe4] sm:$0xf]
    %v1424 = vld [vmem:[%s7 + $0xe8] sm:$0xf]
    %v1425 = vld [vmem:[%s7 + $0xec] sm:$0xf]
    %v1426 = vld [vmem:[%s7 + $0xf0] sm:$0xf]
    %v1427 = vld [vmem:[%s7 + $0xf4] sm:$0xf]
    %v1428 = vld [vmem:[%s7 + $0xf8] sm:$0xf]
    %v1429 = vld [vmem:[%s7 + $0xfc] sm:$0xf]
    %v1430 = vld [vmem:[%s8] sm:$0x1]
    %v1431 = vunpack.c.l.bf16 %v1430
    %v1432 = vlaneseq
    %v1433 = vshrl.u32 %v1432, 7
    %v1434 = vsub.s32 0, %v1433
    %v1435 = vrot.slane %v1431, %v1434
    %v1500 = vunpack.c.l.b16 %v1366
    %v1501 = vunpack.c.l.b16 %v1367
    %v1502 = vunpack.c.l.b16 %v1368
    %v1503 = vunpack.c.l.b16 %v1369
    %v1504 = vunpack.c.l.b16 %v1370
    %v1505 = vunpack.c.l.b16 %v1371
    %v1506 = vunpack.c.l.b16 %v1372
    %v1507 = vunpack.c.l.b16 %v1373
    %v1508 = vunpack.c.l.b16 %v1374
    %v1509 = vunpack.c.l.b16 %v1375
    %v1510 = vunpack.c.l.b16 %v1376
    %v1511 = vunpack.c.l.b16 %v1377
    %v1512 = vunpack.c.l.b16 %v1378
    %v1513 = vunpack.c.l.b16 %v1379
    %v1514 = vunpack.c.l.b16 %v1380
    %v1515 = vunpack.c.l.b16 %v1381
    %v1516 = vunpack.c.l.b16 %v1382
    %v1517 = vunpack.c.l.b16 %v1383
    %v1518 = vunpack.c.l.b16 %v1384
    %v1519 = vunpack.c.l.b16 %v1385
    %v1520 = vunpack.c.l.b16 %v1386
    %v1521 = vunpack.c.l.b16 %v1387
    %v1522 = vunpack.c.l.b16 %v1388
    %v1523 = vunpack.c.l.b16 %v1389
    %v1524 = vunpack.c.l.b16 %v1390
    %v1525 = vunpack.c.l.b16 %v1391
    %v1526 = vunpack.c.l.b16 %v1392
    %v1527 = vunpack.c.l.b16 %v1393
    %v1528 = vunpack.c.l.b16 %v1394
    %v1529 = vunpack.c.l.b16 %v1395
    %v1530 = vunpack.c.l.b16 %v1396
    %v1531 = vunpack.c.l.b16 %v1397
    %v1532 = vunpack.c.l.b16 %v1398
    %v1533 = vunpack.c.l.b16 %v1399
    %v1534 = vunpack.c.l.b16 %v1400
    %v1535 = vunpack.c.l.b16 %v1401
    %v1536 = vunpack.c.l.b16 %v1402
    %v1537 = vunpack.c.l.b16 %v1403
    %v1538 = vunpack.c.l.b16 %v1404
    %v1539 = vunpack.c.l.b16 %v1405
    %v1540 = vunpack.c.l.b16 %v1406
    %v1541 = vunpack.c.l.b16 %v1407
    %v1542 = vunpack.c.l.b16 %v1408
    %v1543 = vunpack.c.l.b16 %v1409
    %v1544 = vunpack.c.l.b16 %v1410
    %v1545 = vunpack.c.l.b16 %v1411
    %v1546 = vunpack.c.l.b16 %v1412
    %v1547 = vunpack.c.l.b16 %v1413
    %v1548 = vunpack.c.l.b16 %v1414
    %v1549 = vunpack.c.l.b16 %v1415
    %v1550 = vunpack.c.l.b16 %v1416
    %v1551 = vunpack.c.l.b16 %v1417
    %v1552 = vunpack.c.l.b16 %v1418
    %v1553 = vunpack.c.l.b16 %v1419
    %v1554 = vunpack.c.l.b16 %v1420
    %v1555 = vunpack.c.l.b16 %v1421
    %v1556 = vunpack.c.l.b16 %v1422
    %v1557 = vunpack.c.l.b16 %v1423
    %v1558 = vunpack.c.l.b16 %v1424
    %v1559 = vunpack.c.l.b16 %v1425
    %v1560 = vunpack.c.l.b16 %v1426
    %v1561 = vunpack.c.l.b16 %v1427
    %v1562 = vunpack.c.l.b16 %v1428
    %v1563 = vunpack.c.l.b16 %v1429
    %v1564 = vpack.c.b16 %v1501, %v1500
    %v1565 = vpack.c.b16 %v1503, %v1502
    %v1566 = vpack.c.b16 %v1505, %v1504
    %v1567 = vpack.c.b16 %v1507, %v1506
    %v1568 = vpack.c.b16 %v1509, %v1508
    %v1569 = vpack.c.b16 %v1511, %v1510
    %v1570 = vpack.c.b16 %v1513, %v1512
    %v1571 = vpack.c.b16 %v1515, %v1514
    %v1572 = vpack.c.b16 %v1517, %v1516
    %v1573 = vpack.c.b16 %v1519, %v1518
    %v1574 = vpack.c.b16 %v1521, %v1520
    %v1575 = vpack.c.b16 %v1523, %v1522
    %v1576 = vpack.c.b16 %v1525, %v1524
    %v1577 = vpack.c.b16 %v1527, %v1526
    %v1578 = vpack.c.b16 %v1529, %v1528
    %v1579 = vpack.c.b16 %v1531, %v1530
    %v1580 = vpack.c.b16 %v1533, %v1532
    %v1581 = vpack.c.b16 %v1535, %v1534
    %v1582 = vpack.c.b16 %v1537, %v1536
    %v1583 = vpack.c.b16 %v1539, %v1538
    %v1584 = vpack.c.b16 %v1541, %v1540
    %v1585 = vpack.c.b16 %v1543, %v1542
    %v1586 = vpack.c.b16 %v1545, %v1544
    %v1587 = vpack.c.b16 %v1547, %v1546
    %v1588 = vpack.c.b16 %v1549, %v1548
    %v1589 = vpack.c.b16 %v1551, %v1550
    %v1590 = vpack.c.b16 %v1553, %v1552
    %v1591 = vpack.c.b16 %v1555, %v1554
    %v1592 = vpack.c.b16 %v1557, %v1556
    %v1593 = vpack.c.b16 %v1559, %v1558
    %v1594 = vpack.c.b16 %v1561, %v1560
    %v1595 = vpack.c.b16 %v1563, %v1562
    %1628 = vmatprep.subr.bf16.mxu0 0
    %1629 = vmatpush1.bf16.msra.mxu0 %v1571
    %1630 = vmatprep.subr.bf16.mxu0 0
    %1631 = vmatpush1.bf16.msra.mxu0 %v1570
    %1632 = vmatprep.subr.bf16.mxu0 0
    %1633 = vmatpush1.bf16.msra.mxu0 %v1569
    %1634 = vmatprep.subr.bf16.mxu0 0
    %1635 = vmatpush1.bf16.msra.mxu0 %v1568
    %1636 = vmatprep.subr.bf16.mxu0 0
    %1637 = vmatpush1.bf16.msra.mxu0 %v1567
    %1638 = vmatprep.subr.bf16.mxu0 0
    %1639 = vmatpush1.bf16.msra.mxu0 %v1566
    %1640 = vmatprep.subr.bf16.mxu0 0
    %1641 = vmatpush1.bf16.msra.mxu0 %v1565
    %1642 = vmatprep.subr.bf16.mxu0 0
    %1643 = vmatpush1.bf16.msra.mxu0 %v1564
    %1644 = vmatprep.subr.bf16.mxu0 0
    %1645 = vmatpush2.bf16.msra.mxu0 %v1579
    %1646 = vmatprep.subr.bf16.mxu0 0
    %1647 = vmatpush2.bf16.msra.mxu0 %v1578
    %1648 = vmatprep.subr.bf16.mxu0 0
    %1649 = vmatpush2.bf16.msra.mxu0 %v1577
    %1650 = vmatprep.subr.bf16.mxu0 0
    %1651 = vmatpush2.bf16.msra.mxu0 %v1576
    %1652 = vmatprep.subr.bf16.mxu0 0
    %1653 = vmatpush2.bf16.msra.mxu0 %v1575
    %1654 = vmatprep.subr.bf16.mxu0 0
    %1655 = vmatpush2.bf16.msra.mxu0 %v1574
    %1656 = vmatprep.subr.bf16.mxu0 0
    %1657 = vmatpush2.bf16.msra.mxu0 %v1573
    %1658 = vmatprep.subr.bf16.mxu0 0
    %1659 = vmatpush2.bf16.msra.mxu0 %v1572
    %1660 = vmatprep.mubr.bf16.mxu0 %v1363
    %1661 = vmatmul.mubr.bf16.gmra.mxu0 %v1362
    %v1662 = vpop.f32.mrf.mxu0
    %v1663 = vadd.f32 %v1435, %v1662
    %v1664 = vpop.f32.mrf.mxu0
    %v1665 = vpop.f32.mrf.mxu0
    %v1666 = vpop.f32.mrf.mxu0
    %1667 = vdwg.mxu0
    %1668 = vmatprep.subr.bf16.mxu0 0
    %1669 = vmatpush1.bf16.msra.mxu0 %v1587
    %1670 = vmatprep.subr.bf16.mxu0 0
    %1671 = vmatpush1.bf16.msra.mxu0 %v1586
    %1672 = vmatprep.subr.bf16.mxu0 0
    %1673 = vmatpush1.bf16.msra.mxu0 %v1585
    %1674 = vmatprep.subr.bf16.mxu0 0
    %1675 = vmatpush1.bf16.msra.mxu0 %v1584
    %1676 = vmatprep.subr.bf16.mxu0 0
    %1677 = vmatpush1.bf16.msra.mxu0 %v1583
    %1678 = vmatprep.subr.bf16.mxu0 0
    %1679 = vmatpush1.bf16.msra.mxu0 %v1582
    %1680 = vmatprep.subr.bf16.mxu0 0
    %1681 = vmatpush1.bf16.msra.mxu0 %v1581
    %1682 = vmatprep.subr.bf16.mxu0 0
    %1683 = vmatpush1.bf16.msra.mxu0 %v1580
    %1684 = vmatprep.subr.bf16.mxu0 0
    %1685 = vmatpush2.bf16.msra.mxu0 %v1595
    %1686 = vmatprep.subr.bf16.mxu0 0
    %1687 = vmatpush2.bf16.msra.mxu0 %v1594
    %1688 = vmatprep.subr.bf16.mxu0 0
    %1689 = vmatpush2.bf16.msra.mxu0 %v1593
    %1690 = vmatprep.subr.bf16.mxu0 0
    %1691 = vmatpush2.bf16.msra.mxu0 %v1592
    %1692 = vmatprep.subr.bf16.mxu0 0
    %1693 = vmatpush2.bf16.msra.mxu0 %v1591
    %1694 = vmatprep.subr.bf16.mxu0 0
    %1695 = vmatpush2.bf16.msra.mxu0 %v1590
    %1696 = vmatprep.subr.bf16.mxu0 0
    %1697 = vmatpush2.bf16.msra.mxu0 %v1589
    %1698 = vmatprep.subr.bf16.mxu0 0
    %1699 = vmatpush2.bf16.msra.mxu0 %v1588
    %1700 = vmatprep.mubr.bf16.mxu0 %v1365
    %1701 = vmatmul.mubr.bf16.gmra.mxu0 %v1364
    %v1702 = vpop.f32.mrf.mxu0
    %v1703 = vadd.f32 %v1663, %v1702
    %v1704 = vpop.f32.mrf.mxu0
    %v1705 = vpop.f32.mrf.mxu0
    %v1706 = vpop.f32.mrf.mxu0
    %1707 = vdwg.mxu0
    %v1708 = vpack.c.bf16 %v1703, %v1703
    %v1709 = vld [vmem:[%s9] sm:$0xff]
    %v1710 = vld [vmem:[%s9 + $0x8] sm:$0xff]
    %v1711 = vld [vmem:[%s9 + $0x10] sm:$0xff]
    %v1712 = vld [vmem:[%s9 + $0x18] sm:$0xff]
    %v1713 = vld [vmem:[%s9 + $0x20] sm:$0xff]
    %v1714 = vld [vmem:[%s9 + $0x28] sm:$0xff]
    %v1715 = vld [vmem:[%s9 + $0x30] sm:$0xff]
    %v1716 = vld [vmem:[%s9 + $0x38] sm:$0xff]
    %v1717 = vld [vmem:[%s10] sm:$0xf]
    %v1718 = vunpack.c.l.bf16 %v1717
    %v1720 = vlaneseq
    %v1721 = vshrl.u32 %v1720, 7
    %v1722 = vsub.s32 0, %v1721
    %v1723 = vrot.slane %v1718, %v1722
    %v1724 = vlaneseq
    %v1725 = vshrl.u32 %v1724, 7
    %v1726 = vsub.s32 2, %v1725
    %v1727 = vrot.slane %v1718, %v1726
    %v1728 = vlaneseq
    %v1729 = vshrl.u32 %v1728, 7
    %v1730 = vsub.s32 4, %v1729
    %v1731 = vrot.slane %v1718, %v1730
    %v1732 = vlaneseq
    %v1733 = vshrl.u32 %v1732, 7
    %v1734 = vsub.s32 6, %v1733
    %v1735 = vrot.slane %v1718, %v1734
    %v1740 = vlaneseq
    %v1741 = vshrl.u32 %v1740, 7
    %v1742 = vsub.s32 0, %v1741
    %v1743 = vrot.slane %v1723, %v1742
    %v1744 = vlaneseq
    %v1745 = vshrl.u32 %v1744, 7
    %v1746 = vsub.s32 0, %v1745
    %v1747 = vrot.slane %v1727, %v1746
    %v1748 = vlaneseq
    %v1749 = vshrl.u32 %v1748, 7
    %v1750 = vsub.s32 0, %v1749
    %v1751 = vrot.slane %v1731, %v1750
    %v1752 = vlaneseq
    %v1753 = vshrl.u32 %v1752, 7
    %v1754 = vsub.s32 0, %v1753
    %v1755 = vrot.slane %v1735, %v1754
    %v1764 = vunpack.c.l.b16 %v1709
    %v1765 = vunpack.c.h.b16 %v1709
    %v1766 = vunpack.c.l.b16 %v1710
    %v1767 = vunpack.c.h.b16 %v1710
    %v1768 = vunpack.c.l.b16 %v1711
    %v1769 = vunpack.c.h.b16 %v1711
    %v1770 = vunpack.c.l.b16 %v1712
    %v1771 = vunpack.c.h.b16 %v1712
    %v1772 = vunpack.c.l.b16 %v1713
    %v1773 = vunpack.c.h.b16 %v1713
    %v1774 = vunpack.c.l.b16 %v1714
    %v1775 = vunpack.c.h.b16 %v1714
    %v1776 = vunpack.c.l.b16 %v1715
    %v1777 = vunpack.c.h.b16 %v1715
    %v1778 = vunpack.c.l.b16 %v1716
    %v1779 = vunpack.c.h.b16 %v1716
    %v1780 = vpack.c.b16 %v1768, %v1764
    %v1781 = vpack.c.b16 %v1769, %v1765
    %v1782 = vpack.c.b16 %v1770, %v1766
    %v1783 = vpack.c.b16 %v1771, %v1767
    %v1784 = vpack.c.b16 %v1776, %v1772
    %v1785 = vpack.c.b16 %v1777, %v1773
    %v1786 = vpack.c.b16 %v1778, %v1774
    %v1787 = vpack.c.b16 %v1779, %v1775
    %v1797 = vsel %vm250, %v1708, 0
    %1799 = vmatprep.subr.bf16.mxu0 0
    %1800 = vmatpush1.bf16.msra.mxu0 0
    %1801 = vmatprep.subr.bf16.mxu0 0
    %1802 = vmatpush1.bf16.msra.mxu0 0
    %1803 = vmatprep.subr.bf16.mxu0 0
    %1804 = vmatpush1.bf16.msra.mxu0 0
    %1805 = vmatprep.subr.bf16.mxu0 0
    %1806 = vmatpush1.bf16.msra.mxu0 0
    %1807 = vmatprep.subr.bf16.mxu0 0
    %1808 = vmatpush1.bf16.msra.mxu0 0
    %1809 = vmatprep.subr.bf16.mxu0 0
    %1810 = vmatpush1.bf16.msra.mxu0 0
    %1811 = vmatprep.subr.bf16.mxu0 %v1785
    %1812 = vmatpush1.bf16.msra.mxu0 %v1784
    %1813 = vmatprep.subr.bf16.mxu0 %v1781
    %1814 = vmatpush1.bf16.msra.mxu0 %v1780
    %1815 = vmatprep.subr.bf16.mxu0 0
    %1816 = vmatpush2.bf16.msra.mxu0 0
    %1817 = vmatprep.subr.bf16.mxu0 0
    %1818 = vmatpush2.bf16.msra.mxu0 0
    %1819 = vmatprep.subr.bf16.mxu0 0
    %1820 = vmatpush2.bf16.msra.mxu0 0
    %1821 = vmatprep.subr.bf16.mxu0 0
    %1822 = vmatpush2.bf16.msra.mxu0 0
    %1823 = vmatprep.subr.bf16.mxu0 0
    %1824 = vmatpush2.bf16.msra.mxu0 0
    %1825 = vmatprep.subr.bf16.mxu0 0
    %1826 = vmatpush2.bf16.msra.mxu0 0
    %1827 = vmatprep.subr.bf16.mxu0 0
    %1828 = vmatpush2.bf16.msra.mxu0 0
    %1829 = vmatprep.subr.bf16.mxu0 0
    %1830 = vmatpush2.bf16.msra.mxu0 0
    %1831 = vmatprep.mubr.bf16.mxu0 0
    %1832 = vmatmul.mubr.bf16.gmra.mxu0 %v1797
    %v1833 = vpop.f32.mrf.mxu0
    %v1834 = vadd.f32 %v1743, %v1833
    %v1835 = vpop.f32.mrf.mxu0
    %v1836 = vadd.f32 %v1747, %v1835
    %v1837 = vpop.f32.mrf.mxu0
    %v1838 = vpop.f32.mrf.mxu0
    %1839 = vdwg.mxu0
    %1840 = vmatprep.subr.bf16.mxu0 0
    %1841 = vmatpush1.bf16.msra.mxu0 0
    %1842 = vmatprep.subr.bf16.mxu0 0
    %1843 = vmatpush1.bf16.msra.mxu0 0
    %1844 = vmatprep.subr.bf16.mxu0 0
    %1845 = vmatpush1.bf16.msra.mxu0 0
    %1846 = vmatprep.subr.bf16.mxu0 0
    %1847 = vmatpush1.bf16.msra.mxu0 0
    %1848 = vmatprep.subr.bf16.mxu0 0
    %1849 = vmatpush1.bf16.msra.mxu0 0
    %1850 = vmatprep.subr.bf16.mxu0 0
    %1851 = vmatpush1.bf16.msra.mxu0 0
    %1852 = vmatprep.subr.bf16.mxu0 %v1787
    %1853 = vmatpush1.bf16.msra.mxu0 %v1786
    %1854 = vmatprep.subr.bf16.mxu0 %v1783
    %1855 = vmatpush1.bf16.msra.mxu0 %v1782
    %1856 = vmatprep.subr.bf16.mxu0 0
    %1857 = vmatpush2.bf16.msra.mxu0 0
    %1858 = vmatprep.subr.bf16.mxu0 0
    %1859 = vmatpush2.bf16.msra.mxu0 0
    %1860 = vmatprep.subr.bf16.mxu0 0
    %1861 = vmatpush2.bf16.msra.mxu0 0
    %1862 = vmatprep.subr.bf16.mxu0 0
    %1863 = vmatpush2.bf16.msra.mxu0 0
    %1864 = vmatprep.subr.bf16.mxu0 0
    %1865 = vmatpush2.bf16.msra.mxu0 0
    %1866 = vmatprep.subr.bf16.mxu0 0
    %1867 = vmatpush2.bf16.msra.mxu0 0
    %1868 = vmatprep.subr.bf16.mxu0 0
    %1869 = vmatpush2.bf16.msra.mxu0 0
    %1870 = vmatprep.subr.bf16.mxu0 0
    %1871 = vmatpush2.bf16.msra.mxu0 0
    %1872 = vmatprep.mubr.bf16.mxu0 0
    %1873 = vmatmul.mubr.bf16.gmra.mxu0 %v1797
    %v1874 = vpop.f32.mrf.mxu0
    %v1875 = vadd.f32 %v1751, %v1874
    %v1876 = vpop.f32.mrf.mxu0
    %v1877 = vadd.f32 %v1755, %v1876
    %v1878 = vpop.f32.mrf.mxu0
    %v1879 = vpop.f32.mrf.mxu0
    %1880 = vdwg.mxu0
    %v1881 = vmax.f32 %v1834, 0.0
    %v1882 = vmax.f32 %v1836, 0.0
    %v1883 = vmax.f32 %v1875, 0.0
    %v1884 = vmax.f32 %v1877, 0.0
    %v1885 = vpack.c.bf16 %v1881, %v1881
    %v1886 = vpack.c.bf16 %v1882, %v1882
    %v1887 = vpack.c.bf16 %v1883, %v1883
    %v1888 = vpack.c.bf16 %v1884, %v1884
    %v1889 = vld [vmem:[#allocation5] sm:$0xff]
    %v1890 = vld [vmem:[#allocation5 + $0x8] sm:$0xff]
    %v1891 = vld [vmem:[#allocation5 + $0x10] sm:$0xff]
    %v1892 = vld [vmem:[#allocation5 + $0x18] sm:$0xff]
    %v1893 = vld [vmem:[#allocation5 + $0x20] sm:$0xff]
    %v1894 = vld [vmem:[#allocation5 + $0x28] sm:$0xff]
    %v1895 = vld [vmem:[#allocation5 + $0x30] sm:$0xff]
    %v1896 = vld [vmem:[#allocation5 + $0x38] sm:$0xff]
    %v1897 = vld [vmem:[#allocation5 + $0x40] sm:$0xff]
    %v1898 = vld [vmem:[#allocation5 + $0x48] sm:$0xff]
    %v1899 = vld [vmem:[#allocation5 + $0x50] sm:$0xff]
    %v1900 = vld [vmem:[#allocation5 + $0x58] sm:$0xff]
    %v1901 = vld [vmem:[#allocation5 + $0x60] sm:$0xff]
    %v1902 = vld [vmem:[#allocation5 + $0x68] sm:$0xff]
    %v1903 = vld [vmem:[#allocation5 + $0x70] sm:$0xff]
    %v1904 = vld [vmem:[#allocation5 + $0x78] sm:$0xff]
    %v1905 = vld [vmem:[#allocation5 + $0x80] sm:$0xff]
    %v1906 = vld [vmem:[#allocation5 + $0x88] sm:$0xff]
    %v1907 = vld [vmem:[#allocation5 + $0x90] sm:$0xff]
    %v1908 = vld [vmem:[#allocation5 + $0x98] sm:$0xff]
    %v1909 = vld [vmem:[#allocation5 + $0xa0] sm:$0xff]
    %v1910 = vld [vmem:[#allocation5 + $0xa8] sm:$0xff]
    %v1911 = vld [vmem:[#allocation5 + $0xb0] sm:$0xff]
    %v1912 = vld [vmem:[#allocation5 + $0xb8] sm:$0xff]
    %v1913 = vld [vmem:[#allocation5 + $0xc0] sm:$0xff]
    %v1914 = vld [vmem:[#allocation5 + $0xc8] sm:$0xff]
    %v1915 = vld [vmem:[#allocation5 + $0xd0] sm:$0xff]
    %v1916 = vld [vmem:[#allocation5 + $0xd8] sm:$0xff]
    %v1917 = vld [vmem:[#allocation5 + $0xe0] sm:$0xff]
    %v1918 = vld [vmem:[#allocation5 + $0xe8] sm:$0xff]
    %v1919 = vld [vmem:[#allocation5 + $0xf0] sm:$0xff]
    %v1920 = vld [vmem:[#allocation5 + $0xf8] sm:$0xff]
    %v1921 = vld [vmem:[#allocation5 + $0x100] sm:$0xff]
    %v1922 = vld [vmem:[#allocation5 + $0x108] sm:$0xff]
    %v1923 = vld [vmem:[#allocation5 + $0x110] sm:$0xff]
    %v1924 = vld [vmem:[#allocation5 + $0x118] sm:$0xff]
    %v1925 = vld [vmem:[#allocation5 + $0x120] sm:$0xff]
    %v1926 = vld [vmem:[#allocation5 + $0x128] sm:$0xff]
    %v1927 = vld [vmem:[#allocation5 + $0x130] sm:$0xff]
    %v1928 = vld [vmem:[#allocation5 + $0x138] sm:$0xff]
    %v1929 = vld [vmem:[#allocation5 + $0x140] sm:$0xff]
    %v1930 = vld [vmem:[#allocation5 + $0x148] sm:$0xff]
    %v1931 = vld [vmem:[#allocation5 + $0x150] sm:$0xff]
    %v1932 = vld [vmem:[#allocation5 + $0x158] sm:$0xff]
    %v1933 = vld [vmem:[#allocation5 + $0x160] sm:$0xff]
    %v1934 = vld [vmem:[#allocation5 + $0x168] sm:$0xff]
    %v1935 = vld [vmem:[#allocation5 + $0x170] sm:$0xff]
    %v1936 = vld [vmem:[#allocation5 + $0x178] sm:$0xff]
    %v1937 = vld [vmem:[#allocation5 + $0x180] sm:$0xff]
    %v1938 = vld [vmem:[#allocation5 + $0x188] sm:$0xff]
    %v1939 = vld [vmem:[#allocation5 + $0x190] sm:$0xff]
    %v1940 = vld [vmem:[#allocation5 + $0x198] sm:$0xff]
    %v1941 = vld [vmem:[#allocation5 + $0x1a0] sm:$0xff]
    %v1942 = vld [vmem:[#allocation5 + $0x1a8] sm:$0xff]
    %v1943 = vld [vmem:[#allocation5 + $0x1b0] sm:$0xff]
    %v1944 = vld [vmem:[#allocation5 + $0x1b8] sm:$0xff]
    %v1945 = vld [vmem:[#allocation5 + $0x1c0] sm:$0xff]
    %v1946 = vld [vmem:[#allocation5 + $0x1c8] sm:$0xff]
    %v1947 = vld [vmem:[#allocation5 + $0x1d0] sm:$0xff]
    %v1948 = vld [vmem:[#allocation5 + $0x1d8] sm:$0xff]
    %v1949 = vld [vmem:[#allocation5 + $0x1e0] sm:$0xff]
    %v1950 = vld [vmem:[#allocation5 + $0x1e8] sm:$0xff]
    %v1951 = vld [vmem:[#allocation5 + $0x1f0] sm:$0xff]
    %v1952 = vld [vmem:[#allocation5 + $0x1f8] sm:$0xff]
    %v1953 = vld [vmem:[#allocation5 + $0x200] sm:$0xff]
    %v1954 = vld [vmem:[#allocation5 + $0x208] sm:$0xff]
    %v1955 = vld [vmem:[#allocation5 + $0x210] sm:$0xff]
    %v1956 = vld [vmem:[#allocation5 + $0x218] sm:$0xff]
    %v1957 = vld [vmem:[#allocation5 + $0x220] sm:$0xff]
    %v1958 = vld [vmem:[#allocation5 + $0x228] sm:$0xff]
    %v1959 = vld [vmem:[#allocation5 + $0x230] sm:$0xff]
    %v1960 = vld [vmem:[#allocation5 + $0x238] sm:$0xff]
    %v1961 = vld [vmem:[#allocation5 + $0x240] sm:$0xff]
    %v1962 = vld [vmem:[#allocation5 + $0x248] sm:$0xff]
    %v1963 = vld [vmem:[#allocation5 + $0x250] sm:$0xff]
    %v1964 = vld [vmem:[#allocation5 + $0x258] sm:$0xff]
    %v1965 = vld [vmem:[#allocation5 + $0x260] sm:$0xff]
    %v1966 = vld [vmem:[#allocation5 + $0x268] sm:$0xff]
    %v1967 = vld [vmem:[#allocation5 + $0x270] sm:$0xff]
    %v1968 = vld [vmem:[#allocation5 + $0x278] sm:$0xff]
    %v1969 = vld [vmem:[#allocation5 + $0x280] sm:$0xff]
    %v1970 = vld [vmem:[#allocation5 + $0x288] sm:$0xff]
    %v1971 = vld [vmem:[#allocation5 + $0x290] sm:$0xff]
    %v1972 = vld [vmem:[#allocation5 + $0x298] sm:$0xff]
    %v1973 = vld [vmem:[#allocation5 + $0x2a0] sm:$0xff]
    %v1974 = vld [vmem:[#allocation5 + $0x2a8] sm:$0xff]
    %v1975 = vld [vmem:[#allocation5 + $0x2b0] sm:$0xff]
    %v1976 = vld [vmem:[#allocation5 + $0x2b8] sm:$0xff]
    %v1977 = vld [vmem:[#allocation5 + $0x2c0] sm:$0xff]
    %v1978 = vld [vmem:[#allocation5 + $0x2c8] sm:$0xff]
    %v1979 = vld [vmem:[#allocation5 + $0x2d0] sm:$0xff]
    %v1980 = vld [vmem:[#allocation5 + $0x2d8] sm:$0xff]
    %v1981 = vld [vmem:[#allocation5 + $0x2e0] sm:$0xff]
    %v1982 = vld [vmem:[#allocation5 + $0x2e8] sm:$0xff]
    %v1983 = vld [vmem:[#allocation5 + $0x2f0] sm:$0xff]
    %v1984 = vld [vmem:[#allocation5 + $0x2f8] sm:$0xff]
    %v1985 = vld [vmem:[#allocation5 + $0x300] sm:$0xff]
    %v1986 = vld [vmem:[#allocation5 + $0x308] sm:$0xff]
    %v1987 = vld [vmem:[#allocation5 + $0x310] sm:$0xff]
    %v1988 = vld [vmem:[#allocation5 + $0x318] sm:$0xff]
    %v1989 = vld [vmem:[#allocation5 + $0x320] sm:$0xff]
    %v1990 = vld [vmem:[#allocation5 + $0x328] sm:$0xff]
    %v1991 = vld [vmem:[#allocation5 + $0x330] sm:$0xff]
    %v1992 = vld [vmem:[#allocation5 + $0x338] sm:$0xff]
    %v1993 = vld [vmem:[#allocation5 + $0x340] sm:$0xff]
    %v1994 = vld [vmem:[#allocation5 + $0x348] sm:$0xff]
    %v1995 = vld [vmem:[#allocation5 + $0x350] sm:$0xff]
    %v1996 = vld [vmem:[#allocation5 + $0x358] sm:$0xff]
    %v1997 = vld [vmem:[#allocation5 + $0x360] sm:$0xff]
    %v1998 = vld [vmem:[#allocation5 + $0x368] sm:$0xff]
    %v1999 = vld [vmem:[#allocation5 + $0x370] sm:$0xff]
    %v2000 = vld [vmem:[#allocation5 + $0x378] sm:$0xff]
    %v2001 = vld [vmem:[#allocation5 + $0x380] sm:$0xff]
    %v2002 = vld [vmem:[#allocation5 + $0x388] sm:$0xff]
    %v2003 = vld [vmem:[#allocation5 + $0x390] sm:$0xff]
    %v2004 = vld [vmem:[#allocation5 + $0x398] sm:$0xff]
    %v2005 = vld [vmem:[#allocation5 + $0x3a0] sm:$0xff]
    %v2006 = vld [vmem:[#allocation5 + $0x3a8] sm:$0xff]
    %v2007 = vld [vmem:[#allocation5 + $0x3b0] sm:$0xff]
    %v2008 = vld [vmem:[#allocation5 + $0x3b8] sm:$0xff]
    %v2009 = vld [vmem:[#allocation5 + $0x3c0] sm:$0xff]
    %v2010 = vld [vmem:[#allocation5 + $0x3c8] sm:$0xff]
    %v2011 = vld [vmem:[#allocation5 + $0x3d0] sm:$0xff]
    %v2012 = vld [vmem:[#allocation5 + $0x3d8] sm:$0xff]
    %v2013 = vld [vmem:[#allocation5 + $0x3e0] sm:$0xff]
    %v2014 = vld [vmem:[#allocation5 + $0x3e8] sm:$0xff]
    %v2015 = vld [vmem:[#allocation5 + $0x3f0] sm:$0xff]
    %v2016 = vld [vmem:[#allocation5 + $0x3f8] sm:$0xff]
    %v2017 = vld [vmem:[%s12] sm:$0xf]
    %v2018 = vunpack.c.l.bf16 %v2017
    %v2020 = vlaneseq
    %v2021 = vshrl.u32 %v2020, 7
    %v2022 = vsub.s32 0, %v2021
    %v2023 = vrot.slane %v2018, %v2022
    %v2024 = vlaneseq
    %v2025 = vshrl.u32 %v2024, 7
    %v2026 = vsub.s32 2, %v2025
    %v2027 = vrot.slane %v2018, %v2026
    %v2028 = vlaneseq
    %v2029 = vshrl.u32 %v2028, 7
    %v2030 = vsub.s32 4, %v2029
    %v2031 = vrot.slane %v2018, %v2030
    %v2032 = vlaneseq
    %v2033 = vshrl.u32 %v2032, 7
    %v2034 = vsub.s32 6, %v2033
    %v2035 = vrot.slane %v2018, %v2034
    %v2040 = vlaneseq
    %v2041 = vshrl.u32 %v2040, 7
    %v2042 = vsub.s32 0, %v2041
    %v2043 = vrot.slane %v2023, %v2042
    %v2044 = vlaneseq
    %v2045 = vshrl.u32 %v2044, 7
    %v2046 = vsub.s32 0, %v2045
    %v2047 = vrot.slane %v2027, %v2046
    %v2048 = vlaneseq
    %v2049 = vshrl.u32 %v2048, 7
    %v2050 = vsub.s32 0, %v2049
    %v2051 = vrot.slane %v2031, %v2050
    %v2052 = vlaneseq
    %v2053 = vshrl.u32 %v2052, 7
    %v2054 = vsub.s32 0, %v2053
    %v2055 = vrot.slane %v2035, %v2054
    %v2184 = vunpack.c.l.b16 %v1889
    %v2185 = vunpack.c.h.b16 %v1889
    %v2186 = vunpack.c.l.b16 %v1890
    %v2187 = vunpack.c.h.b16 %v1890
    %v2188 = vunpack.c.l.b16 %v1891
    %v2189 = vunpack.c.h.b16 %v1891
    %v2190 = vunpack.c.l.b16 %v1892
    %v2191 = vunpack.c.h.b16 %v1892
    %v2192 = vunpack.c.l.b16 %v1893
    %v2193 = vunpack.c.h.b16 %v1893
    %v2194 = vunpack.c.l.b16 %v1894
    %v2195 = vunpack.c.h.b16 %v1894
    %v2196 = vunpack.c.l.b16 %v1895
    %v2197 = vunpack.c.h.b16 %v1895
    %v2198 = vunpack.c.l.b16 %v1896
    %v2199 = vunpack.c.h.b16 %v1896
    %v2200 = vunpack.c.l.b16 %v1897
    %v2201 = vunpack.c.h.b16 %v1897
    %v2202 = vunpack.c.l.b16 %v1898
    %v2203 = vunpack.c.h.b16 %v1898
    %v2204 = vunpack.c.l.b16 %v1899
    %v2205 = vunpack.c.h.b16 %v1899
    %v2206 = vunpack.c.l.b16 %v1900
    %v2207 = vunpack.c.h.b16 %v1900
    %v2208 = vunpack.c.l.b16 %v1901
    %v2209 = vunpack.c.h.b16 %v1901
    %v2210 = vunpack.c.l.b16 %v1902
    %v2211 = vunpack.c.h.b16 %v1902
    %v2212 = vunpack.c.l.b16 %v1903
    %v2213 = vunpack.c.h.b16 %v1903
    %v2214 = vunpack.c.l.b16 %v1904
    %v2215 = vunpack.c.h.b16 %v1904
    %v2216 = vunpack.c.l.b16 %v1905
    %v2217 = vunpack.c.h.b16 %v1905
    %v2218 = vunpack.c.l.b16 %v1906
    %v2219 = vunpack.c.h.b16 %v1906
    %v2220 = vunpack.c.l.b16 %v1907
    %v2221 = vunpack.c.h.b16 %v1907
    %v2222 = vunpack.c.l.b16 %v1908
    %v2223 = vunpack.c.h.b16 %v1908
    %v2224 = vunpack.c.l.b16 %v1909
    %v2225 = vunpack.c.h.b16 %v1909
    %v2226 = vunpack.c.l.b16 %v1910
    %v2227 = vunpack.c.h.b16 %v1910
    %v2228 = vunpack.c.l.b16 %v1911
    %v2229 = vunpack.c.h.b16 %v1911
    %v2230 = vunpack.c.l.b16 %v1912
    %v2231 = vunpack.c.h.b16 %v1912
    %v2232 = vunpack.c.l.b16 %v1913
    %v2233 = vunpack.c.h.b16 %v1913
    %v2234 = vunpack.c.l.b16 %v1914
    %v2235 = vunpack.c.h.b16 %v1914
    %v2236 = vunpack.c.l.b16 %v1915
    %v2237 = vunpack.c.h.b16 %v1915
    %v2238 = vunpack.c.l.b16 %v1916
    %v2239 = vunpack.c.h.b16 %v1916
    %v2240 = vunpack.c.l.b16 %v1917
    %v2241 = vunpack.c.h.b16 %v1917
    %v2242 = vunpack.c.l.b16 %v1918
    %v2243 = vunpack.c.h.b16 %v1918
    %v2244 = vunpack.c.l.b16 %v1919
    %v2245 = vunpack.c.h.b16 %v1919
    %v2246 = vunpack.c.l.b16 %v1920
    %v2247 = vunpack.c.h.b16 %v1920
    %v2248 = vunpack.c.l.b16 %v1921
    %v2249 = vunpack.c.h.b16 %v1921
    %v2250 = vunpack.c.l.b16 %v1922
    %v2251 = vunpack.c.h.b16 %v1922
    %v2252 = vunpack.c.l.b16 %v1923
    %v2253 = vunpack.c.h.b16 %v1923
    %v2254 = vunpack.c.l.b16 %v1924
    %v2255 = vunpack.c.h.b16 %v1924
    %v2256 = vunpack.c.l.b16 %v1925
    %v2257 = vunpack.c.h.b16 %v1925
    %v2258 = vunpack.c.l.b16 %v1926
    %v2259 = vunpack.c.h.b16 %v1926
    %v2260 = vunpack.c.l.b16 %v1927
    %v2261 = vunpack.c.h.b16 %v1927
    %v2262 = vunpack.c.l.b16 %v1928
    %v2263 = vunpack.c.h.b16 %v1928
    %v2264 = vunpack.c.l.b16 %v1929
    %v2265 = vunpack.c.h.b16 %v1929
    %v2266 = vunpack.c.l.b16 %v1930
    %v2267 = vunpack.c.h.b16 %v1930
    %v2268 = vunpack.c.l.b16 %v1931
    %v2269 = vunpack.c.h.b16 %v1931
    %v2270 = vunpack.c.l.b16 %v1932
    %v2271 = vunpack.c.h.b16 %v1932
    %v2272 = vunpack.c.l.b16 %v1933
    %v2273 = vunpack.c.h.b16 %v1933
    %v2274 = vunpack.c.l.b16 %v1934
    %v2275 = vunpack.c.h.b16 %v1934
    %v2276 = vunpack.c.l.b16 %v1935
    %v2277 = vunpack.c.h.b16 %v1935
    %v2278 = vunpack.c.l.b16 %v1936
    %v2279 = vunpack.c.h.b16 %v1936
    %v2280 = vunpack.c.l.b16 %v1937
    %v2281 = vunpack.c.h.b16 %v1937
    %v2282 = vunpack.c.l.b16 %v1938
    %v2283 = vunpack.c.h.b16 %v1938
    %v2284 = vunpack.c.l.b16 %v1939
    %v2285 = vunpack.c.h.b16 %v1939
    %v2286 = vunpack.c.l.b16 %v1940
    %v2287 = vunpack.c.h.b16 %v1940
    %v2288 = vunpack.c.l.b16 %v1941
    %v2289 = vunpack.c.h.b16 %v1941
    %v2290 = vunpack.c.l.b16 %v1942
    %v2291 = vunpack.c.h.b16 %v1942
    %v2292 = vunpack.c.l.b16 %v1943
    %v2293 = vunpack.c.h.b16 %v1943
    %v2294 = vunpack.c.l.b16 %v1944
    %v2295 = vunpack.c.h.b16 %v1944
    %v2296 = vunpack.c.l.b16 %v1945
    %v2297 = vunpack.c.h.b16 %v1945
    %v2298 = vunpack.c.l.b16 %v1946
    %v2299 = vunpack.c.h.b16 %v1946
    %v2300 = vunpack.c.l.b16 %v1947
    %v2301 = vunpack.c.h.b16 %v1947
    %v2302 = vunpack.c.l.b16 %v1948
    %v2303 = vunpack.c.h.b16 %v1948
    %v2304 = vunpack.c.l.b16 %v1949
    %v2305 = vunpack.c.h.b16 %v1949
    %v2306 = vunpack.c.l.b16 %v1950
    %v2307 = vunpack.c.h.b16 %v1950
    %v2308 = vunpack.c.l.b16 %v1951
    %v2309 = vunpack.c.h.b16 %v1951
    %v2310 = vunpack.c.l.b16 %v1952
    %v2311 = vunpack.c.h.b16 %v1952
    %v2312 = vunpack.c.l.b16 %v1953
    %v2313 = vunpack.c.h.b16 %v1953
    %v2314 = vunpack.c.l.b16 %v1954
    %v2315 = vunpack.c.h.b16 %v1954
    %v2316 = vunpack.c.l.b16 %v1955
    %v2317 = vunpack.c.h.b16 %v1955
    %v2318 = vunpack.c.l.b16 %v1956
    %v2319 = vunpack.c.h.b16 %v1956
    %v2320 = vunpack.c.l.b16 %v1957
    %v2321 = vunpack.c.h.b16 %v1957
    %v2322 = vunpack.c.l.b16 %v1958
    %v2323 = vunpack.c.h.b16 %v1958
    %v2324 = vunpack.c.l.b16 %v1959
    %v2325 = vunpack.c.h.b16 %v1959
    %v2326 = vunpack.c.l.b16 %v1960
    %v2327 = vunpack.c.h.b16 %v1960
    %v2328 = vunpack.c.l.b16 %v1961
    %v2329 = vunpack.c.h.b16 %v1961
    %v2330 = vunpack.c.l.b16 %v1962
    %v2331 = vunpack.c.h.b16 %v1962
    %v2332 = vunpack.c.l.b16 %v1963
    %v2333 = vunpack.c.h.b16 %v1963
    %v2334 = vunpack.c.l.b16 %v1964
    %v2335 = vunpack.c.h.b16 %v1964
    %v2336 = vunpack.c.l.b16 %v1965
    %v2337 = vunpack.c.h.b16 %v1965
    %v2338 = vunpack.c.l.b16 %v1966
    %v2339 = vunpack.c.h.b16 %v1966
    %v2340 = vunpack.c.l.b16 %v1967
    %v2341 = vunpack.c.h.b16 %v1967
    %v2342 = vunpack.c.l.b16 %v1968
    %v2343 = vunpack.c.h.b16 %v1968
    %v2344 = vunpack.c.l.b16 %v1969
    %v2345 = vunpack.c.h.b16 %v1969
    %v2346 = vunpack.c.l.b16 %v1970
    %v2347 = vunpack.c.h.b16 %v1970
    %v2348 = vunpack.c.l.b16 %v1971
    %v2349 = vunpack.c.h.b16 %v1971
    %v2350 = vunpack.c.l.b16 %v1972
    %v2351 = vunpack.c.h.b16 %v1972
    %v2352 = vunpack.c.l.b16 %v1973
    %v2353 = vunpack.c.h.b16 %v1973
    %v2354 = vunpack.c.l.b16 %v1974
    %v2355 = vunpack.c.h.b16 %v1974
    %v2356 = vunpack.c.l.b16 %v1975
    %v2357 = vunpack.c.h.b16 %v1975
    %v2358 = vunpack.c.l.b16 %v1976
    %v2359 = vunpack.c.h.b16 %v1976
    %v2360 = vunpack.c.l.b16 %v1977
    %v2361 = vunpack.c.h.b16 %v1977
    %v2362 = vunpack.c.l.b16 %v1978
    %v2363 = vunpack.c.h.b16 %v1978
    %v2364 = vunpack.c.l.b16 %v1979
    %v2365 = vunpack.c.h.b16 %v1979
    %v2366 = vunpack.c.l.b16 %v1980
    %v2367 = vunpack.c.h.b16 %v1980
    %v2368 = vunpack.c.l.b16 %v1981
    %v2369 = vunpack.c.h.b16 %v1981
    %v2370 = vunpack.c.l.b16 %v1982
    %v2371 = vunpack.c.h.b16 %v1982
    %v2372 = vunpack.c.l.b16 %v1983
    %v2373 = vunpack.c.h.b16 %v1983
    %v2374 = vunpack.c.l.b16 %v1984
    %v2375 = vunpack.c.h.b16 %v1984
    %v2376 = vunpack.c.l.b16 %v1985
    %v2377 = vunpack.c.h.b16 %v1985
    %v2378 = vunpack.c.l.b16 %v1986
    %v2379 = vunpack.c.h.b16 %v1986
    %v2380 = vunpack.c.l.b16 %v1987
    %v2381 = vunpack.c.h.b16 %v1987
    %v2382 = vunpack.c.l.b16 %v1988
    %v2383 = vunpack.c.h.b16 %v1988
    %v2384 = vunpack.c.l.b16 %v1989
    %v2385 = vunpack.c.h.b16 %v1989
    %v2386 = vunpack.c.l.b16 %v1990
    %v2387 = vunpack.c.h.b16 %v1990
    %v2388 = vunpack.c.l.b16 %v1991
    %v2389 = vunpack.c.h.b16 %v1991
    %v2390 = vunpack.c.l.b16 %v1992
    %v2391 = vunpack.c.h.b16 %v1992
    %v2392 = vunpack.c.l.b16 %v1993
    %v2393 = vunpack.c.h.b16 %v1993
    %v2394 = vunpack.c.l.b16 %v1994
    %v2395 = vunpack.c.h.b16 %v1994
    %v2396 = vunpack.c.l.b16 %v1995
    %v2397 = vunpack.c.h.b16 %v1995
    %v2398 = vunpack.c.l.b16 %v1996
    %v2399 = vunpack.c.h.b16 %v1996
    %v2400 = vunpack.c.l.b16 %v1997
    %v2401 = vunpack.c.h.b16 %v1997
    %v2402 = vunpack.c.l.b16 %v1998
    %v2403 = vunpack.c.h.b16 %v1998
    %v2404 = vunpack.c.l.b16 %v1999
    %v2405 = vunpack.c.h.b16 %v1999
    %v2406 = vunpack.c.l.b16 %v2000
    %v2407 = vunpack.c.h.b16 %v2000
    %v2408 = vunpack.c.l.b16 %v2001
    %v2409 = vunpack.c.h.b16 %v2001
    %v2410 = vunpack.c.l.b16 %v2002
    %v2411 = vunpack.c.h.b16 %v2002
    %v2412 = vunpack.c.l.b16 %v2003
    %v2413 = vunpack.c.h.b16 %v2003
    %v2414 = vunpack.c.l.b16 %v2004
    %v2415 = vunpack.c.h.b16 %v2004
    %v2416 = vunpack.c.l.b16 %v2005
    %v2417 = vunpack.c.h.b16 %v2005
    %v2418 = vunpack.c.l.b16 %v2006
    %v2419 = vunpack.c.h.b16 %v2006
    %v2420 = vunpack.c.l.b16 %v2007
    %v2421 = vunpack.c.h.b16 %v2007
    %v2422 = vunpack.c.l.b16 %v2008
    %v2423 = vunpack.c.h.b16 %v2008
    %v2424 = vunpack.c.l.b16 %v2009
    %v2425 = vunpack.c.h.b16 %v2009
    %v2426 = vunpack.c.l.b16 %v2010
    %v2427 = vunpack.c.h.b16 %v2010
    %v2428 = vunpack.c.l.b16 %v2011
    %v2429 = vunpack.c.h.b16 %v2011
    %v2430 = vunpack.c.l.b16 %v2012
    %v2431 = vunpack.c.h.b16 %v2012
    %v2432 = vunpack.c.l.b16 %v2013
    %v2433 = vunpack.c.h.b16 %v2013
    %v2434 = vunpack.c.l.b16 %v2014
    %v2435 = vunpack.c.h.b16 %v2014
    %v2436 = vunpack.c.l.b16 %v2015
    %v2437 = vunpack.c.h.b16 %v2015
    %v2438 = vunpack.c.l.b16 %v2016
    %v2439 = vunpack.c.h.b16 %v2016
    %v2440 = vpack.c.b16 %v2188, %v2184
    %v2441 = vpack.c.b16 %v2189, %v2185
    %v2442 = vpack.c.b16 %v2190, %v2186
    %v2443 = vpack.c.b16 %v2191, %v2187
    %v2444 = vpack.c.b16 %v2196, %v2192
    %v2445 = vpack.c.b16 %v2197, %v2193
    %v2446 = vpack.c.b16 %v2198, %v2194
    %v2447 = vpack.c.b16 %v2199, %v2195
    %v2448 = vpack.c.b16 %v2204, %v2200
    %v2449 = vpack.c.b16 %v2205, %v2201
    %v2450 = vpack.c.b16 %v2206, %v2202
    %v2451 = vpack.c.b16 %v2207, %v2203
    %v2452 = vpack.c.b16 %v2212, %v2208
    %v2453 = vpack.c.b16 %v2213, %v2209
    %v2454 = vpack.c.b16 %v2214, %v2210
    %v2455 = vpack.c.b16 %v2215, %v2211
    %v2456 = vpack.c.b16 %v2220, %v2216
    %v2457 = vpack.c.b16 %v2221, %v2217
    %v2458 = vpack.c.b16 %v2222, %v2218
    %v2459 = vpack.c.b16 %v2223, %v2219
    %v2460 = vpack.c.b16 %v2228, %v2224
    %v2461 = vpack.c.b16 %v2229, %v2225
    %v2462 = vpack.c.b16 %v2230, %v2226
    %v2463 = vpack.c.b16 %v2231, %v2227
    %v2464 = vpack.c.b16 %v2236, %v2232
    %v2465 = vpack.c.b16 %v2237, %v2233
    %v2466 = vpack.c.b16 %v2238, %v2234
    %v2467 = vpack.c.b16 %v2239, %v2235
    %v2468 = vpack.c.b16 %v2244, %v2240
    %v2469 = vpack.c.b16 %v2245, %v2241
    %v2470 = vpack.c.b16 %v2246, %v2242
    %v2471 = vpack.c.b16 %v2247, %v2243
    %v2472 = vpack.c.b16 %v2252, %v2248
    %v2473 = vpack.c.b16 %v2253, %v2249
    %v2474 = vpack.c.b16 %v2254, %v2250
    %v2475 = vpack.c.b16 %v2255, %v2251
    %v2476 = vpack.c.b16 %v2260, %v2256
    %v2477 = vpack.c.b16 %v2261, %v2257
    %v2478 = vpack.c.b16 %v2262, %v2258
    %v2479 = vpack.c.b16 %v2263, %v2259
    %v2480 = vpack.c.b16 %v2268, %v2264
    %v2481 = vpack.c.b16 %v2269, %v2265
    %v2482 = vpack.c.b16 %v2270, %v2266
    %v2483 = vpack.c.b16 %v2271, %v2267
    %v2484 = vpack.c.b16 %v2276, %v2272
    %v2485 = vpack.c.b16 %v2277, %v2273
    %v2486 = vpack.c.b16 %v2278, %v2274
    %v2487 = vpack.c.b16 %v2279, %v2275
    %v2488 = vpack.c.b16 %v2284, %v2280
    %v2489 = vpack.c.b16 %v2285, %v2281
    %v2490 = vpack.c.b16 %v2286, %v2282
    %v2491 = vpack.c.b16 %v2287, %v2283
    %v2492 = vpack.c.b16 %v2292, %v2288
    %v2493 = vpack.c.b16 %v2293, %v2289
    %v2494 = vpack.c.b16 %v2294, %v2290
    %v2495 = vpack.c.b16 %v2295, %v2291
    %v2496 = vpack.c.b16 %v2300, %v2296
    %v2497 = vpack.c.b16 %v2301, %v2297
    %v2498 = vpack.c.b16 %v2302, %v2298
    %v2499 = vpack.c.b16 %v2303, %v2299
    %v2500 = vpack.c.b16 %v2308, %v2304
    %v2501 = vpack.c.b16 %v2309, %v2305
    %v2502 = vpack.c.b16 %v2310, %v2306
    %v2503 = vpack.c.b16 %v2311, %v2307
    %v2504 = vpack.c.b16 %v2316, %v2312
    %v2505 = vpack.c.b16 %v2317, %v2313
    %v2506 = vpack.c.b16 %v2318, %v2314
    %v2507 = vpack.c.b16 %v2319, %v2315
    %v2508 = vpack.c.b16 %v2324, %v2320
    %v2509 = vpack.c.b16 %v2325, %v2321
    %v2510 = vpack.c.b16 %v2326, %v2322
    %v2511 = vpack.c.b16 %v2327, %v2323
    %v2512 = vpack.c.b16 %v2332, %v2328
    %v2513 = vpack.c.b16 %v2333, %v2329
    %v2514 = vpack.c.b16 %v2334, %v2330
    %v2515 = vpack.c.b16 %v2335, %v2331
    %v2516 = vpack.c.b16 %v2340, %v2336
    %v2517 = vpack.c.b16 %v2341, %v2337
    %v2518 = vpack.c.b16 %v2342, %v2338
    %v2519 = vpack.c.b16 %v2343, %v2339
    %v2520 = vpack.c.b16 %v2348, %v2344
    %v2521 = vpack.c.b16 %v2349, %v2345
    %v2522 = vpack.c.b16 %v2350, %v2346
    %v2523 = vpack.c.b16 %v2351, %v2347
    %v2524 = vpack.c.b16 %v2356, %v2352
    %v2525 = vpack.c.b16 %v2357, %v2353
    %v2526 = vpack.c.b16 %v2358, %v2354
    %v2527 = vpack.c.b16 %v2359, %v2355
    %v2528 = vpack.c.b16 %v2364, %v2360
    %v2529 = vpack.c.b16 %v2365, %v2361
    %v2530 = vpack.c.b16 %v2366, %v2362
    %v2531 = vpack.c.b16 %v2367, %v2363
    %v2532 = vpack.c.b16 %v2372, %v2368
    %v2533 = vpack.c.b16 %v2373, %v2369
    %v2534 = vpack.c.b16 %v2374, %v2370
    %v2535 = vpack.c.b16 %v2375, %v2371
    %v2536 = vpack.c.b16 %v2380, %v2376
    %v2537 = vpack.c.b16 %v2381, %v2377
    %v2538 = vpack.c.b16 %v2382, %v2378
    %v2539 = vpack.c.b16 %v2383, %v2379
    %v2540 = vpack.c.b16 %v2388, %v2384
    %v2541 = vpack.c.b16 %v2389, %v2385
    %v2542 = vpack.c.b16 %v2390, %v2386
    %v2543 = vpack.c.b16 %v2391, %v2387
    %v2544 = vpack.c.b16 %v2396, %v2392
    %v2545 = vpack.c.b16 %v2397, %v2393
    %v2546 = vpack.c.b16 %v2398, %v2394
    %v2547 = vpack.c.b16 %v2399, %v2395
    %v2548 = vpack.c.b16 %v2404, %v2400
    %v2549 = vpack.c.b16 %v2405, %v2401
    %v2550 = vpack.c.b16 %v2406, %v2402
    %v2551 = vpack.c.b16 %v2407, %v2403
    %v2552 = vpack.c.b16 %v2412, %v2408
    %v2553 = vpack.c.b16 %v2413, %v2409
    %v2554 = vpack.c.b16 %v2414, %v2410
    %v2555 = vpack.c.b16 %v2415, %v2411
    %v2556 = vpack.c.b16 %v2420, %v2416
    %v2557 = vpack.c.b16 %v2421, %v2417
    %v2558 = vpack.c.b16 %v2422, %v2418
    %v2559 = vpack.c.b16 %v2423, %v2419
    %v2560 = vpack.c.b16 %v2428, %v2424
    %v2561 = vpack.c.b16 %v2429, %v2425
    %v2562 = vpack.c.b16 %v2430, %v2426
    %v2563 = vpack.c.b16 %v2431, %v2427
    %v2564 = vpack.c.b16 %v2436, %v2432
    %v2565 = vpack.c.b16 %v2437, %v2433
    %v2566 = vpack.c.b16 %v2438, %v2434
    %v2567 = vpack.c.b16 %v2439, %v2435
    %2696 = vmatprep.subr.bf16.mxu0 %v2469
    %2697 = vmatpush1.bf16.msra.mxu0 %v2468
    %2698 = vmatprep.subr.bf16.mxu0 %v2465
    %2699 = vmatpush1.bf16.msra.mxu0 %v2464
    %2700 = vmatprep.subr.bf16.mxu0 %v2461
    %2701 = vmatpush1.bf16.msra.mxu0 %v2460
    %2702 = vmatprep.subr.bf16.mxu0 %v2457
    %2703 = vmatpush1.bf16.msra.mxu0 %v2456
    %2704 = vmatprep.subr.bf16.mxu0 %v2453
    %2705 = vmatpush1.bf16.msra.mxu0 %v2452
    %2706 = vmatprep.subr.bf16.mxu0 %v2449
    %2707 = vmatpush1.bf16.msra.mxu0 %v2448
    %2708 = vmatprep.subr.bf16.mxu0 %v2445
    %2709 = vmatpush1.bf16.msra.mxu0 %v2444
    %2710 = vmatprep.subr.bf16.mxu0 %v2441
    %2711 = vmatpush1.bf16.msra.mxu0 %v2440
    %2712 = vmatprep.subr.bf16.mxu0 %v2501
    %2713 = vmatpush2.bf16.msra.mxu0 %v2500
    %2714 = vmatprep.subr.bf16.mxu0 %v2497
    %2715 = vmatpush2.bf16.msra.mxu0 %v2496
    %2716 = vmatprep.subr.bf16.mxu0 %v2493
    %2717 = vmatpush2.bf16.msra.mxu0 %v2492
    %2718 = vmatprep.subr.bf16.mxu0 %v2489
    %2719 = vmatpush2.bf16.msra.mxu0 %v2488
    %2720 = vmatprep.subr.bf16.mxu0 %v2485
    %2721 = vmatpush2.bf16.msra.mxu0 %v2484
    %2722 = vmatprep.subr.bf16.mxu0 %v2481
    %2723 = vmatpush2.bf16.msra.mxu0 %v2480
    %2724 = vmatprep.subr.bf16.mxu0 %v2477
    %2725 = vmatpush2.bf16.msra.mxu0 %v2476
    %2726 = vmatprep.subr.bf16.mxu0 %v2473
    %2727 = vmatpush2.bf16.msra.mxu0 %v2472
    %2728 = vmatprep.mubr.bf16.mxu0 %v1886
    %2729 = vmatmul.mubr.bf16.gmra.mxu0 %v1885
    %v2730 = vpop.f32.mrf.mxu0
    %v2731 = vadd.f32 %v2043, %v2730
    %v2732 = vpop.f32.mrf.mxu0
    %v2733 = vadd.f32 %v2047, %v2732
    %v2734 = vpop.f32.mrf.mxu0
    %v2735 = vpop.f32.mrf.mxu0
    %2736 = vdwg.mxu0
    %2737 = vmatprep.subr.bf16.mxu0 %v2533
    %2738 = vmatpush1.bf16.msra.mxu0 %v2532
    %2739 = vmatprep.subr.bf16.mxu0 %v2529
    %2740 = vmatpush1.bf16.msra.mxu0 %v2528
    %2741 = vmatprep.subr.bf16.mxu0 %v2525
    %2742 = vmatpush1.bf16.msra.mxu0 %v2524
    %2743 = vmatprep.subr.bf16.mxu0 %v2521
    %2744 = vmatpush1.bf16.msra.mxu0 %v2520
    %2745 = vmatprep.subr.bf16.mxu0 %v2517
    %2746 = vmatpush1.bf16.msra.mxu0 %v2516
    %2747 = vmatprep.subr.bf16.mxu0 %v2513
    %2748 = vmatpush1.bf16.msra.mxu0 %v2512
    %2749 = vmatprep.subr.bf16.mxu0 %v2509
    %2750 = vmatpush1.bf16.msra.mxu0 %v2508
    %2751 = vmatprep.subr.bf16.mxu0 %v2505
    %2752 = vmatpush1.bf16.msra.mxu0 %v2504
    %2753 = vmatprep.subr.bf16.mxu0 %v2565
    %2754 = vmatpush2.bf16.msra.mxu0 %v2564
    %2755 = vmatprep.subr.bf16.mxu0 %v2561
    %2756 = vmatpush2.bf16.msra.mxu0 %v2560
    %2757 = vmatprep.subr.bf16.mxu0 %v2557
    %2758 = vmatpush2.bf16.msra.mxu0 %v2556
    %2759 = vmatprep.subr.bf16.mxu0 %v2553
    %2760 = vmatpush2.bf16.msra.mxu0 %v2552
    %2761 = vmatprep.subr.bf16.mxu0 %v2549
    %2762 = vmatpush2.bf16.msra.mxu0 %v2548
    %2763 = vmatprep.subr.bf16.mxu0 %v2545
    %2764 = vmatpush2.bf16.msra.mxu0 %v2544
    %2765 = vmatprep.subr.bf16.mxu0 %v2541
    %2766 = vmatpush2.bf16.msra.mxu0 %v2540
    %2767 = vmatprep.subr.bf16.mxu0 %v2537
    %2768 = vmatpush2.bf16.msra.mxu0 %v2536
    %2769 = vmatprep.mubr.bf16.mxu0 %v1888
    %2770 = vmatmul.mubr.bf16.gmra.mxu0 %v1887
    %v2771 = vpop.f32.mrf.mxu0
    %v2772 = vadd.f32 %v2731, %v2771
    %v2773 = vpop.f32.mrf.mxu0
    %v2774 = vadd.f32 %v2733, %v2773
    %v2775 = vpop.f32.mrf.mxu0
    %v2776 = vpop.f32.mrf.mxu0
    %2777 = vdwg.mxu0
    %2778 = vmatprep.subr.bf16.mxu0 %v2471
    %2779 = vmatpush1.bf16.msra.mxu0 %v2470
    %2780 = vmatprep.subr.bf16.mxu0 %v2467
    %2781 = vmatpush1.bf16.msra.mxu0 %v2466
    %2782 = vmatprep.subr.bf16.mxu0 %v2463
    %2783 = vmatpush1.bf16.msra.mxu0 %v2462
    %2784 = vmatprep.subr.bf16.mxu0 %v2459
    %2785 = vmatpush1.bf16.msra.mxu0 %v2458
    %2786 = vmatprep.subr.bf16.mxu0 %v2455
    %2787 = vmatpush1.bf16.msra.mxu0 %v2454
    %2788 = vmatprep.subr.bf16.mxu0 %v2451
    %2789 = vmatpush1.bf16.msra.mxu0 %v2450
    %2790 = vmatprep.subr.bf16.mxu0 %v2447
    %2791 = vmatpush1.bf16.msra.mxu0 %v2446
    %2792 = vmatprep.subr.bf16.mxu0 %v2443
    %2793 = vmatpush1.bf16.msra.mxu0 %v2442
    %2794 = vmatprep.subr.bf16.mxu0 %v2503
    %2795 = vmatpush2.bf16.msra.mxu0 %v2502
    %2796 = vmatprep.subr.bf16.mxu0 %v2499
    %2797 = vmatpush2.bf16.msra.mxu0 %v2498
    %2798 = vmatprep.subr.bf16.mxu0 %v2495
    %2799 = vmatpush2.bf16.msra.mxu0 %v2494
    %2800 = vmatprep.subr.bf16.mxu0 %v2491
    %2801 = vmatpush2.bf16.msra.mxu0 %v2490
    %2802 = vmatprep.subr.bf16.mxu0 %v2487
    %2803 = vmatpush2.bf16.msra.mxu0 %v2486
    %2804 = vmatprep.subr.bf16.mxu0 %v2483
    %2805 = vmatpush2.bf16.msra.mxu0 %v2482
    %2806 = vmatprep.subr.bf16.mxu0 %v2479
    %2807 = vmatpush2.bf16.msra.mxu0 %v2478
    %2808 = vmatprep.subr.bf16.mxu0 %v2475
    %2809 = vmatpush2.bf16.msra.mxu0 %v2474
    %2810 = vmatprep.mubr.bf16.mxu0 %v1886
    %2811 = vmatmul.mubr.bf16.gmra.mxu0 %v1885
    %v2812 = vpop.f32.mrf.mxu0
    %v2813 = vadd.f32 %v2051, %v2812
    %v2814 = vpop.f32.mrf.mxu0
    %v2815 = vadd.f32 %v2055, %v2814
    %v2816 = vpop.f32.mrf.mxu0
    %v2817 = vpop.f32.mrf.mxu0
    %2818 = vdwg.mxu0
    %2819 = vmatprep.subr.bf16.mxu0 %v2535
    %2820 = vmatpush1.bf16.msra.mxu0 %v2534
    %2821 = vmatprep.subr.bf16.mxu0 %v2531
    %2822 = vmatpush1.bf16.msra.mxu0 %v2530
    %2823 = vmatprep.subr.bf16.mxu0 %v2527
    %2824 = vmatpush1.bf16.msra.mxu0 %v2526
    %2825 = vmatprep.subr.bf16.mxu0 %v2523
    %2826 = vmatpush1.bf16.msra.mxu0 %v2522
    %2827 = vmatprep.subr.bf16.mxu0 %v2519
    %2828 = vmatpush1.bf16.msra.mxu0 %v2518
    %2829 = vmatprep.subr.bf16.mxu0 %v2515
    %2830 = vmatpush1.bf16.msra.mxu0 %v2514
    %2831 = vmatprep.subr.bf16.mxu0 %v2511
    %2832 = vmatpush1.bf16.msra.mxu0 %v2510
    %2833 = vmatprep.subr.bf16.mxu0 %v2507
    %2834 = vmatpush1.bf16.msra.mxu0 %v2506
    %2835 = vmatprep.subr.bf16.mxu0 %v2567
    %2836 = vmatpush2.bf16.msra.mxu0 %v2566
    %2837 = vmatprep.subr.bf16.mxu0 %v2563
    %2838 = vmatpush2.bf16.msra.mxu0 %v2562
    %2839 = vmatprep.subr.bf16.mxu0 %v2559
    %2840 = vmatpush2.bf16.msra.mxu0 %v2558
    %2841 = vmatprep.subr.bf16.mxu0 %v2555
    %2842 = vmatpush2.bf16.msra.mxu0 %v2554
    %2843 = vmatprep.subr.bf16.mxu0 %v2551
    %2844 = vmatpush2.bf16.msra.mxu0 %v2550
    %2845 = vmatprep.subr.bf16.mxu0 %v2547
    %2846 = vmatpush2.bf16.msra.mxu0 %v2546
    %2847 = vmatprep.subr.bf16.mxu0 %v2543
    %2848 = vmatpush2.bf16.msra.mxu0 %v2542
    %2849 = vmatprep.subr.bf16.mxu0 %v2539
    %2850 = vmatpush2.bf16.msra.mxu0 %v2538
    %2851 = vmatprep.mubr.bf16.mxu0 %v1888
    %2852 = vmatmul.mubr.bf16.gmra.mxu0 %v1887
    %v2853 = vpop.f32.mrf.mxu0
    %v2854 = vadd.f32 %v2813, %v2853
    %v2855 = vpop.f32.mrf.mxu0
    %v2856 = vadd.f32 %v2815, %v2855
    %v2857 = vpop.f32.mrf.mxu0
    %v2858 = vpop.f32.mrf.mxu0
    %2859 = vdwg.mxu0
    %v2860 = vmax.f32 %v2772, 0.0
    %v2861 = vmax.f32 %v2774, 0.0
    %v2862 = vmax.f32 %v2854, 0.0
    %v2863 = vmax.f32 %v2856, 0.0
    %v2864 = vpack.c.bf16 %v2860, %v2860
    %v2865 = vpack.c.bf16 %v2861, %v2861
    %v2866 = vpack.c.bf16 %v2862, %v2862
    %v2867 = vpack.c.bf16 %v2863, %v2863
    %v2868 = vld [vmem:[%s13] sm:$0xf]
    %v2869 = vld [vmem:[%s13 + $0x4] sm:$0xf]
    %v2870 = vld [vmem:[%s13 + $0x8] sm:$0xf]
    %v2871 = vld [vmem:[%s13 + $0xc] sm:$0xf]
    %v2872 = vld [vmem:[%s13 + $0x10] sm:$0xf]
    %v2873 = vld [vmem:[%s13 + $0x14] sm:$0xf]
    %v2874 = vld [vmem:[%s13 + $0x18] sm:$0xf]
    %v2875 = vld [vmem:[%s13 + $0x1c] sm:$0xf]
    %v2876 = vld [vmem:[%s13 + $0x20] sm:$0xf]
    %v2877 = vld [vmem:[%s13 + $0x24] sm:$0xf]
    %v2878 = vld [vmem:[%s13 + $0x28] sm:$0xf]
    %v2879 = vld [vmem:[%s13 + $0x2c] sm:$0xf]
    %v2880 = vld [vmem:[%s13 + $0x30] sm:$0xf]
    %v2881 = vld [vmem:[%s13 + $0x34] sm:$0xf]
    %v2882 = vld [vmem:[%s13 + $0x38] sm:$0xf]
    %v2883 = vld [vmem:[%s13 + $0x3c] sm:$0xf]
    %v2884 = vld [vmem:[%s13 + $0x40] sm:$0xf]
    %v2885 = vld [vmem:[%s13 + $0x44] sm:$0xf]
    %v2886 = vld [vmem:[%s13 + $0x48] sm:$0xf]
    %v2887 = vld [vmem:[%s13 + $0x4c] sm:$0xf]
    %v2888 = vld [vmem:[%s13 + $0x50] sm:$0xf]
    %v2889 = vld [vmem:[%s13 + $0x54] sm:$0xf]
    %v2890 = vld [vmem:[%s13 + $0x58] sm:$0xf]
    %v2891 = vld [vmem:[%s13 + $0x5c] sm:$0xf]
    %v2892 = vld [vmem:[%s13 + $0x60] sm:$0xf]
    %v2893 = vld [vmem:[%s13 + $0x64] sm:$0xf]
    %v2894 = vld [vmem:[%s13 + $0x68] sm:$0xf]
    %v2895 = vld [vmem:[%s13 + $0x6c] sm:$0xf]
    %v2896 = vld [vmem:[%s13 + $0x70] sm:$0xf]
    %v2897 = vld [vmem:[%s13 + $0x74] sm:$0xf]
    %v2898 = vld [vmem:[%s13 + $0x78] sm:$0xf]
    %v2899 = vld [vmem:[%s13 + $0x7c] sm:$0xf]
    %v2900 = vld [vmem:[%s13 + $0x80] sm:$0xf]
    %v2901 = vld [vmem:[%s13 + $0x84] sm:$0xf]
    %v2902 = vld [vmem:[%s13 + $0x88] sm:$0xf]
    %v2903 = vld [vmem:[%s13 + $0x8c] sm:$0xf]
    %v2904 = vld [vmem:[%s13 + $0x90] sm:$0xf]
    %v2905 = vld [vmem:[%s13 + $0x94] sm:$0xf]
    %v2906 = vld [vmem:[%s13 + $0x98] sm:$0xf]
    %v2907 = vld [vmem:[%s13 + $0x9c] sm:$0xf]
    %v2908 = vld [vmem:[%s13 + $0xa0] sm:$0xf]
    %v2909 = vld [vmem:[%s13 + $0xa4] sm:$0xf]
    %v2910 = vld [vmem:[%s13 + $0xa8] sm:$0xf]
    %v2911 = vld [vmem:[%s13 + $0xac] sm:$0xf]
    %v2912 = vld [vmem:[%s13 + $0xb0] sm:$0xf]
    %v2913 = vld [vmem:[%s13 + $0xb4] sm:$0xf]
    %v2914 = vld [vmem:[%s13 + $0xb8] sm:$0xf]
    %v2915 = vld [vmem:[%s13 + $0xbc] sm:$0xf]
    %v2916 = vld [vmem:[%s13 + $0xc0] sm:$0xf]
    %v2917 = vld [vmem:[%s13 + $0xc4] sm:$0xf]
    %v2918 = vld [vmem:[%s13 + $0xc8] sm:$0xf]
    %v2919 = vld [vmem:[%s13 + $0xcc] sm:$0xf]
    %v2920 = vld [vmem:[%s13 + $0xd0] sm:$0xf]
    %v2921 = vld [vmem:[%s13 + $0xd4] sm:$0xf]
    %v2922 = vld [vmem:[%s13 + $0xd8] sm:$0xf]
    %v2923 = vld [vmem:[%s13 + $0xdc] sm:$0xf]
    %v2924 = vld [vmem:[%s13 + $0xe0] sm:$0xf]
    %v2925 = vld [vmem:[%s13 + $0xe4] sm:$0xf]
    %v2926 = vld [vmem:[%s13 + $0xe8] sm:$0xf]
    %v2927 = vld [vmem:[%s13 + $0xec] sm:$0xf]
    %v2928 = vld [vmem:[%s13 + $0xf0] sm:$0xf]
    %v2929 = vld [vmem:[%s13 + $0xf4] sm:$0xf]
    %v2930 = vld [vmem:[%s13 + $0xf8] sm:$0xf]
    %v2931 = vld [vmem:[%s13 + $0xfc] sm:$0xf]
    %v2932 = vld [vmem:[%s14] sm:$0x1]
    %v2933 = vunpack.c.l.bf16 %v2932
    %v2934 = vlaneseq
    %v2935 = vshrl.u32 %v2934, 7
    %v2936 = vsub.s32 0, %v2935
    %v2937 = vrot.slane %v2933, %v2936
    %v3002 = vunpack.c.l.b16 %v2868
    %v3003 = vunpack.c.l.b16 %v2869
    %v3004 = vunpack.c.l.b16 %v2870
    %v3005 = vunpack.c.l.b16 %v2871
    %v3006 = vunpack.c.l.b16 %v2872
    %v3007 = vunpack.c.l.b16 %v2873
    %v3008 = vunpack.c.l.b16 %v2874
    %v3009 = vunpack.c.l.b16 %v2875
    %v3010 = vunpack.c.l.b16 %v2876
    %v3011 = vunpack.c.l.b16 %v2877
    %v3012 = vunpack.c.l.b16 %v2878
    %v3013 = vunpack.c.l.b16 %v2879
    %v3014 = vunpack.c.l.b16 %v2880
    %v3015 = vunpack.c.l.b16 %v2881
    %v3016 = vunpack.c.l.b16 %v2882
    %v3017 = vunpack.c.l.b16 %v2883
    %v3018 = vunpack.c.l.b16 %v2884
    %v3019 = vunpack.c.l.b16 %v2885
    %v3020 = vunpack.c.l.b16 %v2886
    %v3021 = vunpack.c.l.b16 %v2887
    %v3022 = vunpack.c.l.b16 %v2888
    %v3023 = vunpack.c.l.b16 %v2889
    %v3024 = vunpack.c.l.b16 %v2890
    %v3025 = vunpack.c.l.b16 %v2891
    %v3026 = vunpack.c.l.b16 %v2892
    %v3027 = vunpack.c.l.b16 %v2893
    %v3028 = vunpack.c.l.b16 %v2894
    %v3029 = vunpack.c.l.b16 %v2895
    %v3030 = vunpack.c.l.b16 %v2896
    %v3031 = vunpack.c.l.b16 %v2897
    %v3032 = vunpack.c.l.b16 %v2898
    %v3033 = vunpack.c.l.b16 %v2899
    %v3034 = vunpack.c.l.b16 %v2900
    %v3035 = vunpack.c.l.b16 %v2901
    %v3036 = vunpack.c.l.b16 %v2902
    %v3037 = vunpack.c.l.b16 %v2903
    %v3038 = vunpack.c.l.b16 %v2904
    %v3039 = vunpack.c.l.b16 %v2905
    %v3040 = vunpack.c.l.b16 %v2906
    %v3041 = vunpack.c.l.b16 %v2907
    %v3042 = vunpack.c.l.b16 %v2908
    %v3043 = vunpack.c.l.b16 %v2909
    %v3044 = vunpack.c.l.b16 %v2910
    %v3045 = vunpack.c.l.b16 %v2911
    %v3046 = vunpack.c.l.b16 %v2912
    %v3047 = vunpack.c.l.b16 %v2913
    %v3048 = vunpack.c.l.b16 %v2914
    %v3049 = vunpack.c.l.b16 %v2915
    %v3050 = vunpack.c.l.b16 %v2916
    %v3051 = vunpack.c.l.b16 %v2917
    %v3052 = vunpack.c.l.b16 %v2918
    %v3053 = vunpack.c.l.b16 %v2919
    %v3054 = vunpack.c.l.b16 %v2920
    %v3055 = vunpack.c.l.b16 %v2921
    %v3056 = vunpack.c.l.b16 %v2922
    %v3057 = vunpack.c.l.b16 %v2923
    %v3058 = vunpack.c.l.b16 %v2924
    %v3059 = vunpack.c.l.b16 %v2925
    %v3060 = vunpack.c.l.b16 %v2926
    %v3061 = vunpack.c.l.b16 %v2927
    %v3062 = vunpack.c.l.b16 %v2928
    %v3063 = vunpack.c.l.b16 %v2929
    %v3064 = vunpack.c.l.b16 %v2930
    %v3065 = vunpack.c.l.b16 %v2931
    %v3066 = vpack.c.b16 %v3003, %v3002
    %v3067 = vpack.c.b16 %v3005, %v3004
    %v3068 = vpack.c.b16 %v3007, %v3006
    %v3069 = vpack.c.b16 %v3009, %v3008
    %v3070 = vpack.c.b16 %v3011, %v3010
    %v3071 = vpack.c.b16 %v3013, %v3012
    %v3072 = vpack.c.b16 %v3015, %v3014
    %v3073 = vpack.c.b16 %v3017, %v3016
    %v3074 = vpack.c.b16 %v3019, %v3018
    %v3075 = vpack.c.b16 %v3021, %v3020
    %v3076 = vpack.c.b16 %v3023, %v3022
    %v3077 = vpack.c.b16 %v3025, %v3024
    %v3078 = vpack.c.b16 %v3027, %v3026
    %v3079 = vpack.c.b16 %v3029, %v3028
    %v3080 = vpack.c.b16 %v3031, %v3030
    %v3081 = vpack.c.b16 %v3033, %v3032
    %v3082 = vpack.c.b16 %v3035, %v3034
    %v3083 = vpack.c.b16 %v3037, %v3036
    %v3084 = vpack.c.b16 %v3039, %v3038
    %v3085 = vpack.c.b16 %v3041, %v3040
    %v3086 = vpack.c.b16 %v3043, %v3042
    %v3087 = vpack.c.b16 %v3045, %v3044
    %v3088 = vpack.c.b16 %v3047, %v3046
    %v3089 = vpack.c.b16 %v3049, %v3048
    %v3090 = vpack.c.b16 %v3051, %v3050
    %v3091 = vpack.c.b16 %v3053, %v3052
    %v3092 = vpack.c.b16 %v3055, %v3054
    %v3093 = vpack.c.b16 %v3057, %v3056
    %v3094 = vpack.c.b16 %v3059, %v3058
    %v3095 = vpack.c.b16 %v3061, %v3060
    %v3096 = vpack.c.b16 %v3063, %v3062
    %v3097 = vpack.c.b16 %v3065, %v3064
    %3130 = vmatprep.subr.bf16.mxu0 0
    %3131 = vmatpush1.bf16.msra.mxu0 %v3073
    %3132 = vmatprep.subr.bf16.mxu0 0
    %3133 = vmatpush1.bf16.msra.mxu0 %v3072
    %3134 = vmatprep.subr.bf16.mxu0 0
    %3135 = vmatpush1.bf16.msra.mxu0 %v3071
    %3136 = vmatprep.subr.bf16.mxu0 0
    %3137 = vmatpush1.bf16.msra.mxu0 %v3070
    %3138 = vmatprep.subr.bf16.mxu0 0
    %3139 = vmatpush1.bf16.msra.mxu0 %v3069
    %3140 = vmatprep.subr.bf16.mxu0 0
    %3141 = vmatpush1.bf16.msra.mxu0 %v3068
    %3142 = vmatprep.subr.bf16.mxu0 0
    %3143 = vmatpush1.bf16.msra.mxu0 %v3067
    %3144 = vmatprep.subr.bf16.mxu0 0
    %3145 = vmatpush1.bf16.msra.mxu0 %v3066
    %3146 = vmatprep.subr.bf16.mxu0 0
    %3147 = vmatpush2.bf16.msra.mxu0 %v3081
    %3148 = vmatprep.subr.bf16.mxu0 0
    %3149 = vmatpush2.bf16.msra.mxu0 %v3080
    %3150 = vmatprep.subr.bf16.mxu0 0
    %3151 = vmatpush2.bf16.msra.mxu0 %v3079
    %3152 = vmatprep.subr.bf16.mxu0 0
    %3153 = vmatpush2.bf16.msra.mxu0 %v3078
    %3154 = vmatprep.subr.bf16.mxu0 0
    %3155 = vmatpush2.bf16.msra.mxu0 %v3077
    %3156 = vmatprep.subr.bf16.mxu0 0
    %3157 = vmatpush2.bf16.msra.mxu0 %v3076
    %3158 = vmatprep.subr.bf16.mxu0 0
    %3159 = vmatpush2.bf16.msra.mxu0 %v3075
    %3160 = vmatprep.subr.bf16.mxu0 0
    %3161 = vmatpush2.bf16.msra.mxu0 %v3074
    %3162 = vmatprep.mubr.bf16.mxu0 %v2865
    %3163 = vmatmul.mubr.bf16.gmra.mxu0 %v2864
    %v3164 = vpop.f32.mrf.mxu0
    %v3165 = vadd.f32 %v2937, %v3164
    %v3166 = vpop.f32.mrf.mxu0
    %v3167 = vpop.f32.mrf.mxu0
    %v3168 = vpop.f32.mrf.mxu0
    %3169 = vdwg.mxu0
    %3170 = vmatprep.subr.bf16.mxu0 0
    %3171 = vmatpush1.bf16.msra.mxu0 %v3089
    %3172 = vmatprep.subr.bf16.mxu0 0
    %3173 = vmatpush1.bf16.msra.mxu0 %v3088
    %3174 = vmatprep.subr.bf16.mxu0 0
    %3175 = vmatpush1.bf16.msra.mxu0 %v3087
    %3176 = vmatprep.subr.bf16.mxu0 0
    %3177 = vmatpush1.bf16.msra.mxu0 %v3086
    %3178 = vmatprep.subr.bf16.mxu0 0
    %3179 = vmatpush1.bf16.msra.mxu0 %v3085
    %3180 = vmatprep.subr.bf16.mxu0 0
    %3181 = vmatpush1.bf16.msra.mxu0 %v3084
    %3182 = vmatprep.subr.bf16.mxu0 0
    %3183 = vmatpush1.bf16.msra.mxu0 %v3083
    %3184 = vmatprep.subr.bf16.mxu0 0
    %3185 = vmatpush1.bf16.msra.mxu0 %v3082
    %3186 = vmatprep.subr.bf16.mxu0 0
    %3187 = vmatpush2.bf16.msra.mxu0 %v3097
    %3188 = vmatprep.subr.bf16.mxu0 0
    %3189 = vmatpush2.bf16.msra.mxu0 %v3096
    %3190 = vmatprep.subr.bf16.mxu0 0
    %3191 = vmatpush2.bf16.msra.mxu0 %v3095
    %3192 = vmatprep.subr.bf16.mxu0 0
    %3193 = vmatpush2.bf16.msra.mxu0 %v3094
    %3194 = vmatprep.subr.bf16.mxu0 0
    %3195 = vmatpush2.bf16.msra.mxu0 %v3093
    %3196 = vmatprep.subr.bf16.mxu0 0
    %3197 = vmatpush2.bf16.msra.mxu0 %v3092
    %3198 = vmatprep.subr.bf16.mxu0 0
    %3199 = vmatpush2.bf16.msra.mxu0 %v3091
    %3200 = vmatprep.subr.bf16.mxu0 0
    %3201 = vmatpush2.bf16.msra.mxu0 %v3090
    %3202 = vmatprep.mubr.bf16.mxu0 %v2867
    %3203 = vmatmul.mubr.bf16.gmra.mxu0 %v2866
    %v3204 = vpop.f32.mrf.mxu0
    %v3205 = vadd.f32 %v3165, %v3204
    %v3206 = vpop.f32.mrf.mxu0
    %v3207 = vpop.f32.mrf.mxu0
    %v3208 = vpop.f32.mrf.mxu0
    %3209 = vdwg.mxu0
    %vm3210 = vcmask 130048
    %3211 = vst.msk [vmem:[#allocation7] sm:$0xff] %vm3210, %v3205
    // Predicated region
    $region70: #{tpu_custom_call.1} parent=1 // pred_check
      _
    $region71: #{tpu_custom_call.1} parent=1 // pred_check_branch
      %3213 = sbr.rel (0) target = $region73
    $region72: #{tpu_custom_call.1} parent=1 // pred_region
      %s3215 = ssub.s32 128, 128
      %3216 = vsyncadd [#allocation4], %s3215
      %s3218 = sshll.u32 [#allocation7], 4
      %s3219 = int_to_ptr.vmem [resolvable:$true] %s3218
      %3221 = dma.vmem_to_hbm [thread:$0]  %s3219, 128, %s15, [#allocation4]
    $region73: #{tpu_custom_call.1} parent=1 // pred_fallthru
      _
    // Predicated region
    $region74: #{tpu_custom_call.1} parent=1 // pred_check
      _
    $region75: #{tpu_custom_call.1} parent=1 // pred_check_branch
      %3223 = sbr.rel (0) target = $region77
    $region76: #{tpu_custom_call.1} parent=1 // pred_region
      %3224 = dma.done [#allocation4], 128
    $region77: #{tpu_custom_call.1} parent=1 // pred_fallthru
      _
    %3225 = vsyncpa [#allocation3], 1
    %3226 = vsyncpa [#allocation6], 1
    %3227 = vsyncpa [#allocation4], 1

</llo_original>
